<compile_context>
chip_gen: v7x
topology: tpu7x:2x2x1
jax: 0.10.0
libtpu: 0.0.40
codegen_flags: <defaults>
</compile_context>

<pallas_src>
import functools
import math

import jax
import jax.numpy as jnp
from jax.experimental import pallas as pl
from jax.experimental.pallas import tpu as pltpu


def _round_up(x, m):
    return (x + m - 1) // m * m


# ----------------------------------------------------------------------------
# In-kernel helpers
# ----------------------------------------------------------------------------

def _layer_norm(y, g, b, eps):
    # Matches the reference LayerNormalization: unbiased std (torch.std default,
    # divide by n-1) and epsilon added to the STD (not the variance). f32 math.
    n = y.shape[-1]
    mean = jnp.mean(y, axis=-1, keepdims=True)
    d = y - mean
    var = jnp.sum(d * d, axis=-1, keepdims=True) * (1.0 / (n - 1))
    std = jnp.sqrt(var)
    return g * d / (std + eps) + b


def _mha_tail(q, k, v, mask, x_res, wo_ref, bo_ref, g_ref, b_ref, o_ref,
              *, heads, d_head, scale, eps):
    """Per-head attention + output projection + residual + LayerNorm.

    q:(Lq,D) f32, k/v:(Lk,D) f32, mask:(Lq,Lk) int32 (nonzero == masked).
    All heads of one batch element are handled inside this single grid step.
    """
    ctx_parts = []
    for h in range(heads):                        # static unrolled head loop
        sl = slice(h * d_head, (h + 1) * d_head)
        qh = q[:, sl].astype(jnp.bfloat16)
        kh = k[:, sl].astype(jnp.bfloat16)
        vh = v[:, sl].astype(jnp.bfloat16)
        # contract over d_head of both operands -> q @ k^T without an XLU transpose
        s = jax.lax.dot_general(qh, kh, (((1,), (1,)), ((), ())),
                                preferred_element_type=jnp.float32) * scale
        s = jnp.where(mask > 0, jnp.float32(-1e18), s)     # f32 mask-fill
        s = s - jnp.max(s, axis=-1, keepdims=True)          # f32 softmax
        p = jnp.exp(s)
        p = p * pl.reciprocal(jnp.sum(p, axis=-1, keepdims=True), approx=True)
        ctx_parts.append(
            jnp.dot(p.astype(jnp.bfloat16), vh, preferred_element_type=jnp.float32))
    ctx = jnp.concatenate(ctx_parts, axis=-1)                # (Lq, D) head recombine
    proj = jnp.dot(ctx.astype(jnp.bfloat16), wo_ref[...],
                   preferred_element_type=jnp.float32) + bo_ref[...]
    y = proj + x_res                                         # residual (dropout = id)
    o_ref[0] = _layer_norm(y, g_ref[...], b_ref[...], eps)


# ----------------------------------------------------------------------------
# Pallas kernels
# ----------------------------------------------------------------------------

def _self_attn_sublayer_kernel(x_ref, mask_ref, wqkv_ref, bqkv_ref, wo_ref, bo_ref,
                               g_ref, b_ref, o_ref, *, heads, d_head, scale, eps):
    d_model = heads * d_head
    x = x_ref[0]                                             # (Lq, D) f32
    qkv = jnp.dot(x.astype(jnp.bfloat16), wqkv_ref[...],
                  preferred_element_type=jnp.float32) + bqkv_ref[...]
    q = qkv[:, :d_model]
    k = qkv[:, d_model:2 * d_model]
    v = qkv[:, 2 * d_model:]
    _mha_tail(q, k, v, mask_ref[0], x, wo_ref, bo_ref, g_ref, b_ref, o_ref,
              heads=heads, d_head=d_head, scale=scale, eps=eps)


def _memory_attn_sublayer_kernel(x_ref, mem_ref, mask_ref, wq_ref, bq_ref,
                                 wkv_ref, bkv_ref, wo_ref, bo_ref,
                                 g_ref, b_ref, o_ref, *, heads, d_head, scale, eps):
    d_model = heads * d_head
    x = x_ref[0]                                             # (Lq, D) f32
    mem = mem_ref[0]                                         # (Lk, D) f32
    q = jnp.dot(x.astype(jnp.bfloat16), wq_ref[...],
                preferred_element_type=jnp.float32) + bq_ref[...]
    kv = jnp.dot(mem.astype(jnp.bfloat16), wkv_ref[...],
                 preferred_element_type=jnp.float32) + bkv_ref[...]
    k = kv[:, :d_model]
    v = kv[:, d_model:]
    _mha_tail(q, k, v, mask_ref[0], x, wo_ref, bo_ref, g_ref, b_ref, o_ref,
              heads=heads, d_head=d_head, scale=scale, eps=eps)


def _ffn_sublayer_kernel(x_ref, w1_ref, b1_ref, w2_ref, b2_ref, g_ref, b_ref, o_ref,
                         *, eps):
    # Linear -> ReLU -> Linear -> residual -> LayerNorm, all fused.
    x = x_ref[...]                                           # (tm, D) f32
    h = jnp.dot(x.astype(jnp.bfloat16), w1_ref[...],
                preferred_element_type=jnp.float32) + b1_ref[...]
    h = jnp.maximum(h, 0.0)
    y = jnp.dot(h.astype(jnp.bfloat16), w2_ref[...],
                preferred_element_type=jnp.float32) + b2_ref[...]
    y = y + x
    o_ref[...] = _layer_norm(y, g_ref[...], b_ref[...], eps)


def _generator_kernel(x_ref, e_ref, b_ref, o_ref):
    # logits = x @ emb^T + b, consuming the tied (V, D) table directly via
    # dot_general (no transposed copy of the embedding in HBM).
    o_ref[...] = jax.lax.dot_general(
        x_ref[...].astype(jnp.bfloat16), e_ref[...],
        (((1,), (1,)), ((), ())),
        preferred_element_type=jnp.float32) + b_ref[...]


# ----------------------------------------------------------------------------
# pallas_call wrappers
# ----------------------------------------------------------------------------

def self_attention_sublayer(x, mask_i32, p, heads_count, eps=1e-6):
    B, Lq, D = x.shape
    d_head = D // heads_count
    kern = functools.partial(_self_attn_sublayer_kernel, heads=heads_count,
                             d_head=d_head, scale=1.0 / math.sqrt(d_head), eps=eps)
    return pl.pallas_call(
        kern,
        out_shape=jax.ShapeDtypeStruct((B, Lq, D), jnp.float32),
        grid=(B,),
        in_specs=[
            pl.BlockSpec((1, Lq, D), lambda i: (i, 0, 0)),
            pl.BlockSpec((1, Lq, Lq), lambda i: (i, 0, 0)),
            pl.BlockSpec((D, 3 * D), lambda i: (0, 0)),
            pl.BlockSpec((1, 3 * D), lambda i: (0, 0)),
            pl.BlockSpec((D, D), lambda i: (0, 0)),
            pl.BlockSpec((1, D), lambda i: (0, 0)),
            pl.BlockSpec((1, D), lambda i: (0, 0)),
            pl.BlockSpec((1, D), lambda i: (0, 0)),
        ],
        out_specs=pl.BlockSpec((1, Lq, D), lambda i: (i, 0, 0)),
        compiler_params=pltpu.CompilerParams(dimension_semantics=("parallel",)),
    )(x, mask_i32, p["wqkv"], p["bqkv"], p["wo"], p["bo"], p["ln_g"], p["ln_b"])


def memory_attention_sublayer(x, memory, mask_i32, p, heads_count, eps=1e-6):
    B, Lq, D = x.shape
    _, Lk, _ = memory.shape
    d_head = D // heads_count
    kern = functools.partial(_memory_attn_sublayer_kernel, heads=heads_count,
                             d_head=d_head, scale=1.0 / math.sqrt(d_head), eps=eps)
    return pl.pallas_call(
        kern,
        out_shape=jax.ShapeDtypeStruct((B, Lq, D), jnp.float32),
        grid=(B,),
        in_specs=[
            pl.BlockSpec((1, Lq, D), lambda i: (i, 0, 0)),
            pl.BlockSpec((1, Lk, D), lambda i: (i, 0, 0)),
            pl.BlockSpec((1, Lq, Lk), lambda i: (i, 0, 0)),
            pl.BlockSpec((D, D), lambda i: (0, 0)),
            pl.BlockSpec((1, D), lambda i: (0, 0)),
            pl.BlockSpec((D, 2 * D), lambda i: (0, 0)),
            pl.BlockSpec((1, 2 * D), lambda i: (0, 0)),
            pl.BlockSpec((D, D), lambda i: (0, 0)),
            pl.BlockSpec((1, D), lambda i: (0, 0)),
            pl.BlockSpec((1, D), lambda i: (0, 0)),
            pl.BlockSpec((1, D), lambda i: (0, 0)),
        ],
        out_specs=pl.BlockSpec((1, Lq, D), lambda i: (i, 0, 0)),
        compiler_params=pltpu.CompilerParams(dimension_semantics=("parallel",)),
    )(x, memory, mask_i32, p["wq"], p["bq"], p["wkv"], p["bkv"],
      p["wo"], p["bo"], p["ln_g"], p["ln_b"])


def ffn_sublayer(x2d, p, eps=1e-6):
    M, D = x2d.shape
    Dff = p["w1"].shape[1]
    tm = M if M <= 256 else 256              # row tile -> pipelined at large M
    kern = functools.partial(_ffn_sublayer_kernel, eps=eps)
    return pl.pallas_call(
        kern,
        out_shape=jax.ShapeDtypeStruct((M, D), jnp.float32),
        grid=(pl.cdiv(M, tm),),
        in_specs=[
            pl.BlockSpec((tm, D), lambda i: (i, 0)),
            pl.BlockSpec((D, Dff), lambda i: (0, 0)),
            pl.BlockSpec((1, Dff), lambda i: (0, 0)),
            pl.BlockSpec((Dff, D), lambda i: (0, 0)),
            pl.BlockSpec((1, D), lambda i: (0, 0)),
            pl.BlockSpec((1, D), lambda i: (0, 0)),
            pl.BlockSpec((1, D), lambda i: (0, 0)),
        ],
        out_specs=pl.BlockSpec((tm, D), lambda i: (i, 0)),
        compiler_params=pltpu.CompilerParams(dimension_semantics=("parallel",)),
    )(x2d, p["w1"], p["b1"], p["w2"], p["b2"], p["ln_g"], p["ln_b"])


def generator(x2d, emb_pad, gen_b_pad):
    M, D = x2d.shape
    Vp = emb_pad.shape[0]                    # already a multiple of 128 (lane-dense)
    tm = M if M <= 256 else 256
    tn = Vp if Vp <= 512 else 512
    return pl.pallas_call(
        _generator_kernel,
        out_shape=jax.ShapeDtypeStruct((M, Vp), jnp.float32),
        grid=(pl.cdiv(M, tm), pl.cdiv(Vp, tn)),
        in_specs=[
            pl.BlockSpec((tm, D), lambda i, j: (i, 0)),
            pl.BlockSpec((tn, D), lambda i, j: (j, 0)),
            pl.BlockSpec((1, tn), lambda i, j: (0, j)),
        ],
        out_specs=pl.BlockSpec((tm, tn), lambda i, j: (i, j)),
        compiler_params=pltpu.CompilerParams(
            dimension_semantics=("parallel", "parallel")),
    )(x2d, emb_pad, gen_b_pad)


# ----------------------------------------------------------------------------
# Model glue (reshapes / parameter plumbing stay in plain JAX)
# ----------------------------------------------------------------------------

def decoder_layer(x, memory, memory_mask_i32, inputs_mask_i32, lp, heads_count):
    B, Lq, D = x.shape
    x = self_attention_sublayer(x, inputs_mask_i32, lp["self_attn"], heads_count)
    x = memory_attention_sublayer(x, memory, memory_mask_i32, lp["mem_attn"],
                                  heads_count)
    x = ffn_sublayer(x.reshape(B * Lq, D), lp["ffn"]).reshape(B, Lq, D)
    return x


def transformer_decoder_forward(params, token_ids, memory, memory_mask,
                                inputs_mask=None, heads_count=4):
    """Matches TransformerDecoder.forward with state=None; returns (logits, None)."""
    emb_pad = params["embedding"]            # (Vpad, D) bf16, rows >= vocab are zero
    vocab = params["vocab"]
    x = jnp.take(emb_pad, token_ids, axis=0).astype(jnp.float32)   # embedding lookup
    B, Lq, D = x.shape
    Lk = memory.shape[1]

    # masks stay at their original (B, Lq, Lk) shape -- no per-head broadcast in HBM
    if inputs_mask is None:
        inputs_mask_i32 = jnp.zeros((B, Lq, Lq), jnp.int32)
    else:
        inputs_mask_i32 = inputs_mask.astype(jnp.int32)
    if memory_mask is None:
        memory_mask_i32 = jnp.zeros((B, Lq, Lk), jnp.int32)
    else:
        memory_mask_i32 = memory_mask.astype(jnp.int32)

    for lp in params["layers"]:
        x = decoder_layer(x, memory.astype(jnp.float32), memory_mask_i32,
                          inputs_mask_i32, lp, heads_count)

    logits_pad = generator(x.reshape(B * Lq, D), emb_pad, params["gen_b_pad"])
    logits = logits_pad[:, :vocab].reshape(B, Lq, vocab)
    return logits, None
    # TODO(synk): DecoderState / layer_cache incremental-decoding path is host-side
    # bookkeeping (dict of tensors), not a kernel; only the state=None path is built.


# ----------------------------------------------------------------------------
# Deterministic parameter construction
# ----------------------------------------------------------------------------

def init_params(key, layers_count, d_model, d_ff, vocab):
    bf16 = jnp.bfloat16

    def nrm(k, shape, scale=0.05, dtype=jnp.float32):
        return (scale * jax.random.normal(k, shape)).astype(dtype)

    keys = iter(jax.random.split(key, 8 + layers_count * 16))

    vocab_pad = _round_up(vocab, 128)        # lane-dense generator output
    emb = nrm(next(keys), (vocab, d_model))
    emb_pad = jnp.zeros((vocab_pad, d_model), jnp.float32).at[:vocab].set(emb)
    gen_b = nrm(next(keys), (vocab,))
    gen_b_pad = jnp.zeros((1, vocab_pad), jnp.float32).at[0, :vocab].set(gen_b)

    params = {
        "embedding": emb_pad.astype(bf16),   # weights stored bf16 (tied generator)
        "gen_b_pad": gen_b_pad,
        "vocab": vocab,
        "layers": [],
    }
    for _ in range(layers_count):
        self_attn = {
            "wqkv": nrm(next(keys), (d_model, 3 * d_model), dtype=bf16),
            "bqkv": nrm(next(keys), (1, 3 * d_model)),
            "wo": nrm(next(keys), (d_model, d_model), dtype=bf16),
            "bo": nrm(next(keys), (1, d_model)),
            "ln_g": jnp.ones((1, d_model), jnp.float32),
            "ln_b": jnp.zeros((1, d_model), jnp.float32),
        }
        mem_attn = {
            "wq": nrm(next(keys), (d_model, d_model), dtype=bf16),
            "bq": nrm(next(keys), (1, d_model)),
            "wkv": nrm(next(keys), (d_model, 2 * d_model), dtype=bf16),
            "bkv": nrm(next(keys), (1, 2 * d_model)),
            "wo": nrm(next(keys), (d_model, d_model), dtype=bf16),
            "bo": nrm(next(keys), (1, d_model)),
            "ln_g": jnp.ones((1, d_model), jnp.float32),
            "ln_b": jnp.zeros((1, d_model), jnp.float32),
        }
        ffn_p = {
            "w1": nrm(next(keys), (d_model, d_ff), dtype=bf16),
            "b1": nrm(next(keys), (1, d_ff)),
            "w2": nrm(next(keys), (d_ff, d_model), dtype=bf16),
            "b2": nrm(next(keys), (1, d_model)),
            "ln_g": jnp.ones((1, d_model), jnp.float32),
            "ln_b": jnp.zeros((1, d_model), jnp.float32),
        }
        params["layers"].append(
            {"self_attn": self_attn, "mem_attn": mem_attn, "ffn": ffn_p})
    return params


# ----------------------------------------------------------------------------
# Main
# ----------------------------------------------------------------------------

if __name__ == "__main__":
    layers_count = 2
    d_model = 32
    heads_count = 4
    d_ff = 64
    vocab = 50
    B, tgt_len, src_len = 2, 8, 8

    root = jax.random.PRNGKey(0)
    k_par, k_tok, k_mem = jax.random.split(root, 3)

    params = init_params(k_par, layers_count, d_model, d_ff, vocab)
    token_ids = jax.random.randint(k_tok, (B, tgt_len), 0, vocab, dtype=jnp.int32)
    memory = (0.1 * jax.random.normal(k_mem, (B, src_len, d_model))).astype(jnp.float32)

    # memory_mask: (B, tgt_len, src_len), no positions masked
    memory_mask = jnp.zeros((B, tgt_len, src_len), dtype=bool)
    # inputs_mask: causal mask (True == masked future position)
    causal = jnp.triu(jnp.ones((tgt_len, tgt_len), dtype=bool), k=1)
    inputs_mask = jnp.broadcast_to(causal[None], (B, tgt_len, tgt_len))

    logits, state = transformer_decoder_forward(
        params, token_ids, memory, memory_mask, inputs_mask, heads_count
    )
    logits = jax.block_until_ready(logits)
    assert logits.shape == (B, tgt_len, vocab)
    assert bool(jnp.all(jnp.isfinite(logits)))
    print("KERNEL_OK")
</pallas_src>

<mosaic_0001>
module attributes {stable_mosaic.version = 11 : i64} {
  func.func @_self_attn_sublayer_kernel(%arg0: i32, %arg1: memref<1x8x32xf32, #tpu.memory_space<vmem>>, %arg2: memref<1x8x8xi32, #tpu.memory_space<vmem>>, %arg3: memref<32x96xbf16, #tpu.memory_space<vmem>>, %arg4: memref<1x96xf32, #tpu.memory_space<vmem>>, %arg5: memref<32x32xbf16, #tpu.memory_space<vmem>>, %arg6: memref<1x32xf32, #tpu.memory_space<vmem>>, %arg7: memref<1x32xf32, #tpu.memory_space<vmem>>, %arg8: memref<1x32xf32, #tpu.memory_space<vmem>>, %arg9: memref<1x8x32xf32, #tpu.memory_space<vmem>>) attributes {dimension_semantics = [#tpu.dimension_semantics<parallel>], iteration_bounds = array<i64: 2>, scalar_prefetch = 0 : i64, scratch_operands = 0 : i64, tpu.core_type = #tpu.core_type<tc>, window_params = [{transform_indices = @transform_0, window_bounds = array<i64: 1, 8, 32>}, {transform_indices = @transform_1, window_bounds = array<i64: 1, 8, 8>}, {pipeline_mode = #tpu.pipeline_mode<synchronous>, transform_indices = @transform_2, window_bounds = array<i64: 32, 96>}, {pipeline_mode = #tpu.pipeline_mode<synchronous>, transform_indices = @transform_3, window_bounds = array<i64: 1, 96>}, {pipeline_mode = #tpu.pipeline_mode<synchronous>, transform_indices = @transform_4, window_bounds = array<i64: 32, 32>}, {pipeline_mode = #tpu.pipeline_mode<synchronous>, transform_indices = @transform_5, window_bounds = array<i64: 1, 32>}, {pipeline_mode = #tpu.pipeline_mode<synchronous>, transform_indices = @transform_6, window_bounds = array<i64: 1, 32>}, {pipeline_mode = #tpu.pipeline_mode<synchronous>, transform_indices = @transform_7, window_bounds = array<i64: 1, 32>}, {transform_indices = @transform_8, window_bounds = array<i64: 1, 8, 32>}]} {
    %c0 = arith.constant 0 : index
    %c0_0 = arith.constant 0 : index
    %c0_1 = arith.constant 0 : index
    %0 = vector.load %arg1[%c0, %c0_0, %c0_1] : memref<1x8x32xf32, #tpu.memory_space<vmem>>, vector<1x8x32xf32>
    %1 = vector.shape_cast %0 : vector<1x8x32xf32> to vector<8x32xf32>
    %2 = arith.truncf %1 : vector<8x32xf32> to vector<8x32xbf16>
    %c0_2 = arith.constant 0 : index
    %c0_3 = arith.constant 0 : index
    %3 = vector.load %arg3[%c0_2, %c0_3] : memref<32x96xbf16, #tpu.memory_space<vmem>>, vector<32x96xbf16>
    %cst = arith.constant dense<0.000000e+00> : vector<8x96xf32>
    %4 = tpu.matmul %2, %3, %cst {dimension_numbers = #tpu.dot_dimension_numbers<[1], [0], [0], [1], [0, 0, 1, 1], [], []>} : vector<8x32xbf16>, vector<32x96xbf16>, vector<8x96xf32> -> vector<8x96xf32>
    %c0_4 = arith.constant 0 : index
    %c0_5 = arith.constant 0 : index
    %5 = vector.load %arg4[%c0_4, %c0_5] : memref<1x96xf32, #tpu.memory_space<vmem>>, vector<1x96xf32>
    %6 = vector.broadcast %5 : vector<1x96xf32> to vector<8x96xf32>
    %7 = arith.addf %4, %6 : vector<8x96xf32>
    %8 = vector.extract_strided_slice %7 {offsets = [0, 0], sizes = [8, 32], strides = [1, 1]} : vector<8x96xf32> to vector<8x32xf32>
    %9 = vector.extract_strided_slice %7 {offsets = [0, 32], sizes = [8, 32], strides = [1, 1]} : vector<8x96xf32> to vector<8x32xf32>
    %10 = vector.extract_strided_slice %7 {offsets = [0, 64], sizes = [8, 32], strides = [1, 1]} : vector<8x96xf32> to vector<8x32xf32>
    %c0_6 = arith.constant 0 : index
    %c0_7 = arith.constant 0 : index
    %c0_8 = arith.constant 0 : index
    %11 = vector.load %arg2[%c0_6, %c0_7, %c0_8] : memref<1x8x8xi32, #tpu.memory_space<vmem>>, vector<1x8x8xi32>
    %12 = vector.shape_cast %11 : vector<1x8x8xi32> to vector<8x8xi32>
    %13 = vector.extract_strided_slice %8 {offsets = [0, 0], sizes = [8, 8], strides = [1, 1]} : vector<8x32xf32> to vector<8x8xf32>
    %14 = arith.truncf %13 : vector<8x8xf32> to vector<8x8xbf16>
    %15 = vector.extract_strided_slice %9 {offsets = [0, 0], sizes = [8, 8], strides = [1, 1]} : vector<8x32xf32> to vector<8x8xf32>
    %16 = arith.truncf %15 : vector<8x8xf32> to vector<8x8xbf16>
    %17 = vector.extract_strided_slice %10 {offsets = [0, 0], sizes = [8, 8], strides = [1, 1]} : vector<8x32xf32> to vector<8x8xf32>
    %18 = arith.truncf %17 : vector<8x8xf32> to vector<8x8xbf16>
    %cst_9 = arith.constant dense<0.000000e+00> : vector<8x8xf32>
    %19 = tpu.matmul %14, %16, %cst_9 {dimension_numbers = #tpu.dot_dimension_numbers<[1], [1], [0], [0], [0, 0, 1, 0], [], []>} : vector<8x8xbf16>, vector<8x8xbf16>, vector<8x8xf32> -> vector<8x8xf32>
    %cst_10 = arith.constant 0.353553385 : f32
    %20 = vector.broadcast %cst_10 : f32 to vector<8x8xf32>
    %21 = arith.mulf %19, %20 : vector<8x8xf32>
    %c0_i32 = arith.constant 0 : i32
    %22 = vector.broadcast %c0_i32 : i32 to vector<8x8xi32>
    %23 = arith.cmpi sgt, %12, %22 : vector<8x8xi32>
    %cst_11 = arith.constant -9.99999984E+17 : f32
    %24 = vector.broadcast %cst_11 : f32 to vector<8x8xf32>
    %25 = arith.select %23, %24, %21 : vector<8x8xi1>, vector<8x8xf32>
    %cst_12 = arith.constant dense<0xFF800000> : vector<8xf32>
    %26 = vector.multi_reduction <maximumf>, %25, %cst_12 [1] : vector<8x8xf32> to vector<8xf32>
    %27 = vector.shape_cast %26 : vector<8xf32> to vector<8x1xf32>
    %28 = vector.broadcast %27 : vector<8x1xf32> to vector<8x8xf32>
    %29 = arith.subf %25, %28 : vector<8x8xf32>
    %30 = math.exp %29 : vector<8x8xf32>
    %cst_13 = arith.constant dense<0.000000e+00> : vector<8xf32>
    %31 = vector.multi_reduction <add>, %30, %cst_13 [1] : vector<8x8xf32> to vector<8xf32>
    %32 = vector.shape_cast %31 : vector<8xf32> to vector<8x1xf32>
    %33 = tpu.reciprocal %32 {approx = true} : vector<8x1xf32> -> vector<8x1xf32>
    %34 = vector.broadcast %33 : vector<8x1xf32> to vector<8x8xf32>
    %35 = arith.mulf %30, %34 : vector<8x8xf32>
    %36 = arith.truncf %35 : vector<8x8xf32> to vector<8x8xbf16>
    %cst_14 = arith.constant dense<0.000000e+00> : vector<8x8xf32>
    %37 = tpu.matmul %36, %18, %cst_14 {dimension_numbers = #tpu.dot_dimension_numbers<[1], [0], [0], [1], [0, 0, 1, 1], [], []>} : vector<8x8xbf16>, vector<8x8xbf16>, vector<8x8xf32> -> vector<8x8xf32>
    %38 = vector.extract_strided_slice %8 {offsets = [0, 8], sizes = [8, 8], strides = [1, 1]} : vector<8x32xf32> to vector<8x8xf32>
    %39 = arith.truncf %38 : vector<8x8xf32> to vector<8x8xbf16>
    %40 = vector.extract_strided_slice %9 {offsets = [0, 8], sizes = [8, 8], strides = [1, 1]} : vector<8x32xf32> to vector<8x8xf32>
    %41 = arith.truncf %40 : vector<8x8xf32> to vector<8x8xbf16>
    %42 = vector.extract_strided_slice %10 {offsets = [0, 8], sizes = [8, 8], strides = [1, 1]} : vector<8x32xf32> to vector<8x8xf32>
    %43 = arith.truncf %42 : vector<8x8xf32> to vector<8x8xbf16>
    %cst_15 = arith.constant dense<0.000000e+00> : vector<8x8xf32>
    %44 = tpu.matmul %39, %41, %cst_15 {dimension_numbers = #tpu.dot_dimension_numbers<[1], [1], [0], [0], [0, 0, 1, 0], [], []>} : vector<8x8xbf16>, vector<8x8xbf16>, vector<8x8xf32> -> vector<8x8xf32>
    %cst_16 = arith.constant 0.353553385 : f32
    %45 = vector.broadcast %cst_16 : f32 to vector<8x8xf32>
    %46 = arith.mulf %44, %45 : vector<8x8xf32>
    %c0_i32_17 = arith.constant 0 : i32
    %47 = vector.broadcast %c0_i32_17 : i32 to vector<8x8xi32>
    %48 = arith.cmpi sgt, %12, %47 : vector<8x8xi32>
    %cst_18 = arith.constant -9.99999984E+17 : f32
    %49 = vector.broadcast %cst_18 : f32 to vector<8x8xf32>
    %50 = arith.select %48, %49, %46 : vector<8x8xi1>, vector<8x8xf32>
    %cst_19 = arith.constant dense<0xFF800000> : vector<8xf32>
    %51 = vector.multi_reduction <maximumf>, %50, %cst_19 [1] : vector<8x8xf32> to vector<8xf32>
    %52 = vector.shape_cast %51 : vector<8xf32> to vector<8x1xf32>
    %53 = vector.broadcast %52 : vector<8x1xf32> to vector<8x8xf32>
    %54 = arith.subf %50, %53 : vector<8x8xf32>
    %55 = math.exp %54 : vector<8x8xf32>
    %cst_20 = arith.constant dense<0.000000e+00> : vector<8xf32>
    %56 = vector.multi_reduction <add>, %55, %cst_20 [1] : vector<8x8xf32> to vector<8xf32>
    %57 = vector.shape_cast %56 : vector<8xf32> to vector<8x1xf32>
    %58 = tpu.reciprocal %57 {approx = true} : vector<8x1xf32> -> vector<8x1xf32>
    %59 = vector.broadcast %58 : vector<8x1xf32> to vector<8x8xf32>
    %60 = arith.mulf %55, %59 : vector<8x8xf32>
    %61 = arith.truncf %60 : vector<8x8xf32> to vector<8x8xbf16>
    %cst_21 = arith.constant dense<0.000000e+00> : vector<8x8xf32>
    %62 = tpu.matmul %61, %43, %cst_21 {dimension_numbers = #tpu.dot_dimension_numbers<[1], [0], [0], [1], [0, 0, 1, 1], [], []>} : vector<8x8xbf16>, vector<8x8xbf16>, vector<8x8xf32> -> vector<8x8xf32>
    %63 = vector.extract_strided_slice %8 {offsets = [0, 16], sizes = [8, 8], strides = [1, 1]} : vector<8x32xf32> to vector<8x8xf32>
    %64 = arith.truncf %63 : vector<8x8xf32> to vector<8x8xbf16>
    %65 = vector.extract_strided_slice %9 {offsets = [0, 16], sizes = [8, 8], strides = [1, 1]} : vector<8x32xf32> to vector<8x8xf32>
    %66 = arith.truncf %65 : vector<8x8xf32> to vector<8x8xbf16>
    %67 = vector.extract_strided_slice %10 {offsets = [0, 16], sizes = [8, 8], strides = [1, 1]} : vector<8x32xf32> to vector<8x8xf32>
    %68 = arith.truncf %67 : vector<8x8xf32> to vector<8x8xbf16>
    %cst_22 = arith.constant dense<0.000000e+00> : vector<8x8xf32>
    %69 = tpu.matmul %64, %66, %cst_22 {dimension_numbers = #tpu.dot_dimension_numbers<[1], [1], [0], [0], [0, 0, 1, 0], [], []>} : vector<8x8xbf16>, vector<8x8xbf16>, vector<8x8xf32> -> vector<8x8xf32>
    %cst_23 = arith.constant 0.353553385 : f32
    %70 = vector.broadcast %cst_23 : f32 to vector<8x8xf32>
    %71 = arith.mulf %69, %70 : vector<8x8xf32>
    %c0_i32_24 = arith.constant 0 : i32
    %72 = vector.broadcast %c0_i32_24 : i32 to vector<8x8xi32>
    %73 = arith.cmpi sgt, %12, %72 : vector<8x8xi32>
    %cst_25 = arith.constant -9.99999984E+17 : f32
    %74 = vector.broadcast %cst_25 : f32 to vector<8x8xf32>
    %75 = arith.select %73, %74, %71 : vector<8x8xi1>, vector<8x8xf32>
    %cst_26 = arith.constant dense<0xFF800000> : vector<8xf32>
    %76 = vector.multi_reduction <maximumf>, %75, %cst_26 [1] : vector<8x8xf32> to vector<8xf32>
    %77 = vector.shape_cast %76 : vector<8xf32> to vector<8x1xf32>
    %78 = vector.broadcast %77 : vector<8x1xf32> to vector<8x8xf32>
    %79 = arith.subf %75, %78 : vector<8x8xf32>
    %80 = math.exp %79 : vector<8x8xf32>
    %cst_27 = arith.constant dense<0.000000e+00> : vector<8xf32>
    %81 = vector.multi_reduction <add>, %80, %cst_27 [1] : vector<8x8xf32> to vector<8xf32>
    %82 = vector.shape_cast %81 : vector<8xf32> to vector<8x1xf32>
    %83 = tpu.reciprocal %82 {approx = true} : vector<8x1xf32> -> vector<8x1xf32>
    %84 = vector.broadcast %83 : vector<8x1xf32> to vector<8x8xf32>
    %85 = arith.mulf %80, %84 : vector<8x8xf32>
    %86 = arith.truncf %85 : vector<8x8xf32> to vector<8x8xbf16>
    %cst_28 = arith.constant dense<0.000000e+00> : vector<8x8xf32>
    %87 = tpu.matmul %86, %68, %cst_28 {dimension_numbers = #tpu.dot_dimension_numbers<[1], [0], [0], [1], [0, 0, 1, 1], [], []>} : vector<8x8xbf16>, vector<8x8xbf16>, vector<8x8xf32> -> vector<8x8xf32>
    %88 = vector.extract_strided_slice %8 {offsets = [0, 24], sizes = [8, 8], strides = [1, 1]} : vector<8x32xf32> to vector<8x8xf32>
    %89 = arith.truncf %88 : vector<8x8xf32> to vector<8x8xbf16>
    %90 = vector.extract_strided_slice %9 {offsets = [0, 24], sizes = [8, 8], strides = [1, 1]} : vector<8x32xf32> to vector<8x8xf32>
    %91 = arith.truncf %90 : vector<8x8xf32> to vector<8x8xbf16>
    %92 = vector.extract_strided_slice %10 {offsets = [0, 24], sizes = [8, 8], strides = [1, 1]} : vector<8x32xf32> to vector<8x8xf32>
    %93 = arith.truncf %92 : vector<8x8xf32> to vector<8x8xbf16>
    %cst_29 = arith.constant dense<0.000000e+00> : vector<8x8xf32>
    %94 = tpu.matmul %89, %91, %cst_29 {dimension_numbers = #tpu.dot_dimension_numbers<[1], [1], [0], [0], [0, 0, 1, 0], [], []>} : vector<8x8xbf16>, vector<8x8xbf16>, vector<8x8xf32> -> vector<8x8xf32>
    %cst_30 = arith.constant 0.353553385 : f32
    %95 = vector.broadcast %cst_30 : f32 to vector<8x8xf32>
    %96 = arith.mulf %94, %95 : vector<8x8xf32>
    %c0_i32_31 = arith.constant 0 : i32
    %97 = vector.broadcast %c0_i32_31 : i32 to vector<8x8xi32>
    %98 = arith.cmpi sgt, %12, %97 : vector<8x8xi32>
    %cst_32 = arith.constant -9.99999984E+17 : f32
    %99 = vector.broadcast %cst_32 : f32 to vector<8x8xf32>
    %100 = arith.select %98, %99, %96 : vector<8x8xi1>, vector<8x8xf32>
    %cst_33 = arith.constant dense<0xFF800000> : vector<8xf32>
    %101 = vector.multi_reduction <maximumf>, %100, %cst_33 [1] : vector<8x8xf32> to vector<8xf32>
    %102 = vector.shape_cast %101 : vector<8xf32> to vector<8x1xf32>
    %103 = vector.broadcast %102 : vector<8x1xf32> to vector<8x8xf32>
    %104 = arith.subf %100, %103 : vector<8x8xf32>
    %105 = math.exp %104 : vector<8x8xf32>
    %cst_34 = arith.constant dense<0.000000e+00> : vector<8xf32>
    %106 = vector.multi_reduction <add>, %105, %cst_34 [1] : vector<8x8xf32> to vector<8xf32>
    %107 = vector.shape_cast %106 : vector<8xf32> to vector<8x1xf32>
    %108 = tpu.reciprocal %107 {approx = true} : vector<8x1xf32> -> vector<8x1xf32>
    %109 = vector.broadcast %108 : vector<8x1xf32> to vector<8x8xf32>
    %110 = arith.mulf %105, %109 : vector<8x8xf32>
    %111 = arith.truncf %110 : vector<8x8xf32> to vector<8x8xbf16>
    %cst_35 = arith.constant dense<0.000000e+00> : vector<8x8xf32>
    %112 = tpu.matmul %111, %93, %cst_35 {dimension_numbers = #tpu.dot_dimension_numbers<[1], [0], [0], [1], [0, 0, 1, 1], [], []>} : vector<8x8xbf16>, vector<8x8xbf16>, vector<8x8xf32> -> vector<8x8xf32>
    %113 = tpu.concatenate %37, %62, %87, %112 in 1 : vector<8x8xf32>, vector<8x8xf32>, vector<8x8xf32>, vector<8x8xf32> -> vector<8x32xf32>
    %114 = arith.truncf %113 : vector<8x32xf32> to vector<8x32xbf16>
    %c0_36 = arith.constant 0 : index
    %c0_37 = arith.constant 0 : index
    %115 = vector.load %arg5[%c0_36, %c0_37] : memref<32x32xbf16, #tpu.memory_space<vmem>>, vector<32x32xbf16>
    %cst_38 = arith.constant dense<0.000000e+00> : vector<8x32xf32>
    %116 = tpu.matmul %114, %115, %cst_38 {dimension_numbers = #tpu.dot_dimension_numbers<[1], [0], [0], [1], [0, 0, 1, 1], [], []>} : vector<8x32xbf16>, vector<32x32xbf16>, vector<8x32xf32> -> vector<8x32xf32>
    %c0_39 = arith.constant 0 : index
    %c0_40 = arith.constant 0 : index
    %117 = vector.load %arg6[%c0_39, %c0_40] : memref<1x32xf32, #tpu.memory_space<vmem>>, vector<1x32xf32>
    %118 = vector.broadcast %117 : vector<1x32xf32> to vector<8x32xf32>
    %119 = arith.addf %116, %118 : vector<8x32xf32>
    %120 = arith.addf %119, %1 : vector<8x32xf32>
    %c0_41 = arith.constant 0 : index
    %c0_42 = arith.constant 0 : index
    %121 = vector.load %arg7[%c0_41, %c0_42] : memref<1x32xf32, #tpu.memory_space<vmem>>, vector<1x32xf32>
    %c0_43 = arith.constant 0 : index
    %c0_44 = arith.constant 0 : index
    %122 = vector.load %arg8[%c0_43, %c0_44] : memref<1x32xf32, #tpu.memory_space<vmem>>, vector<1x32xf32>
    %cst_45 = arith.constant dense<0.000000e+00> : vector<8xf32>
    %123 = vector.multi_reduction <add>, %120, %cst_45 [1] : vector<8x32xf32> to vector<8xf32>
    %124 = vector.shape_cast %123 : vector<8xf32> to vector<8x1xf32>
    %cst_46 = arith.constant 3.200000e+01 : f32
    %125 = vector.broadcast %cst_46 : f32 to vector<8x1xf32>
    %126 = arith.divf %124, %125 : vector<8x1xf32>
    %127 = vector.broadcast %126 : vector<8x1xf32> to vector<8x32xf32>
    %128 = arith.subf %120, %127 : vector<8x32xf32>
    %129 = arith.mulf %128, %128 : vector<8x32xf32>
    %cst_47 = arith.constant dense<0.000000e+00> : vector<8xf32>
    %130 = vector.multi_reduction <add>, %129, %cst_47 [1] : vector<8x32xf32> to vector<8xf32>
    %131 = vector.shape_cast %130 : vector<8xf32> to vector<8x1xf32>
    %cst_48 = arith.constant 0.0322580636 : f32
    %132 = vector.broadcast %cst_48 : f32 to vector<8x1xf32>
    %133 = arith.mulf %131, %132 : vector<8x1xf32>
    %134 = math.sqrt %133 : vector<8x1xf32>
    %135 = vector.broadcast %121 : vector<1x32xf32> to vector<8x32xf32>
    %136 = arith.mulf %135, %128 : vector<8x32xf32>
    %cst_49 = arith.constant 9.99999997E-7 : f32
    %137 = vector.broadcast %cst_49 : f32 to vector<8x1xf32>
    %138 = arith.addf %134, %137 : vector<8x1xf32>
    %139 = vector.broadcast %138 : vector<8x1xf32> to vector<8x32xf32>
    %140 = arith.divf %136, %139 : vector<8x32xf32>
    %141 = vector.broadcast %122 : vector<1x32xf32> to vector<8x32xf32>
    %142 = arith.addf %140, %141 : vector<8x32xf32>
    %c0_50 = arith.constant 0 : index
    %c0_51 = arith.constant 0 : index
    %c0_52 = arith.constant 0 : index
    %143 = vector.load %arg9[%c0_50, %c0_51, %c0_52] : memref<1x8x32xf32, #tpu.memory_space<vmem>>, vector<1x8x32xf32>
    %144 = vector.shape_cast %143 : vector<1x8x32xf32> to vector<8x32xf32>
    %145 = vector.shape_cast %142 : vector<8x32xf32> to vector<1x8x32xf32>
    tpu.vector_store %arg9[%c0_50, %c0_51, %c0_52], %145 {strides = array<i32>} : memref<1x8x32xf32, #tpu.memory_space<vmem>>, vector<1x8x32xf32>,
    return
  }
  func.func @transform_0(%arg0: i32) -> (i32, i32, i32) {
    %c0_i32 = arith.constant 0 : i32
    %c0_i32_0 = arith.constant 0 : i32
    %c0_i32_1 = arith.constant 0 : i32
    return %arg0, %c0_i32, %c0_i32_0 : i32, i32, i32
  }
  func.func @transform_1(%arg0: i32) -> (i32, i32, i32) {
    %c0_i32 = arith.constant 0 : i32
    %c0_i32_0 = arith.constant 0 : i32
    %c0_i32_1 = arith.constant 0 : i32
    return %arg0, %c0_i32, %c0_i32_0 : i32, i32, i32
  }
  func.func @transform_2(%arg0: i32) -> (i32, i32) {
    %c0_i32 = arith.constant 0 : i32
    %c0_i32_0 = arith.constant 0 : i32
    %c0_i32_1 = arith.constant 0 : i32
    return %c0_i32, %c0_i32_0 : i32, i32
  }
  func.func @transform_3(%arg0: i32) -> (i32, i32) {
    %c0_i32 = arith.constant 0 : i32
    %c0_i32_0 = arith.constant 0 : i32
    %c0_i32_1 = arith.constant 0 : i32
    return %c0_i32, %c0_i32_0 : i32, i32
  }
  func.func @transform_4(%arg0: i32) -> (i32, i32) {
    %c0_i32 = arith.constant 0 : i32
    %c0_i32_0 = arith.constant 0 : i32
    %c0_i32_1 = arith.constant 0 : i32
    return %c0_i32, %c0_i32_0 : i32, i32
  }
  func.func @transform_5(%arg0: i32) -> (i32, i32) {
    %c0_i32 = arith.constant 0 : i32
    %c0_i32_0 = arith.constant 0 : i32
    %c0_i32_1 = arith.constant 0 : i32
    return %c0_i32, %c0_i32_0 : i32, i32
  }
  func.func @transform_6(%arg0: i32) -> (i32, i32) {
    %c0_i32 = arith.constant 0 : i32
    %c0_i32_0 = arith.constant 0 : i32
    %c0_i32_1 = arith.constant 0 : i32
    return %c0_i32, %c0_i32_0 : i32, i32
  }
  func.func @transform_7(%arg0: i32) -> (i32, i32) {
    %c0_i32 = arith.constant 0 : i32
    %c0_i32_0 = arith.constant 0 : i32
    %c0_i32_1 = arith.constant 0 : i32
    return %c0_i32, %c0_i32_0 : i32, i32
  }
  func.func @transform_8(%arg0: i32) -> (i32, i32, i32) {
    %c0_i32 = arith.constant 0 : i32
    %c0_i32_0 = arith.constant 0 : i32
    %c0_i32_1 = arith.constant 0 : i32
    return %arg0, %c0_i32, %c0_i32_0 : i32, i32, i32
  }
}

</mosaic_0001>

<llo_original>
// kernel: tpu_custom_call.1
$region0: #{tpu_custom_call.1}
  #allocation0 [shape = 'u32[]', space=smem, size = 0x4, offset = 0x4, fixed_abs, tag = 'smem constant byte address 0x4 - core index']
  #allocation1 [shape = 'u32[144,128]{1,0:T(1,128)}', space=vmem, size = 0x12000, scoped, tag = 'internal scratch']
  %s0 = inlined_call_operand.hbm [shape: f32[2,8,32], index: 0, kind: input, shape index: {}]
  %s1 = inlined_call_operand.hbm [shape: s32[2,8,8], index: 1, kind: input, shape index: {}]
  %s2 = inlined_call_operand.hbm [shape: bf16[32,96], index: 2, kind: input, shape index: {}]
  %s3 = inlined_call_operand.vmem [shape: f32[1,96], index: 3, kind: input, shape index: {}]
  %s4 = inlined_call_operand.hbm [shape: bf16[32,32], index: 4, kind: input, shape index: {}]
  %s5 = inlined_call_operand.vmem [shape: f32[1,32], index: 5, kind: input, shape index: {}]
  %s6 = inlined_call_operand.vmem [shape: f32[1,32], index: 6, kind: input, shape index: {}]
  %s7 = inlined_call_operand.vmem [shape: f32[1,32], index: 7, kind: input, shape index: {}]
  %s8 = inlined_call_operand.hbm [shape: f32[2,8,32], index: 8, kind: output, shape index: {}]
  %s9 = sld [smem:[#allocation0]]
  $region81: #{tpu_custom_call.1} parent=0
    _
  %s11 = ssub.s32 1, %s9
  %s12 = scalar_select 0, %s11, %s9
  $region1: #{tpu_custom_call.1} parent=0
    #allocation2 [shape = 'u8[8192]{0}', space=vmem, size = 0x2000, scoped, tag = 'input window, operand 0']
    #allocation3 [shape = 's32[2]{0}', space=sflag, size = 0x8, scoped, tag = 'scoped memory for tpu_custom_call.1']
    #allocation4 [shape = 's32[2]{0}', space=sflag, size = 0x8, scoped, tag = 'scoped memory for tpu_custom_call.1']
    #allocation5 [shape = 'u8[8192]{0}', space=vmem, size = 0x2000, scoped, tag = 'input window, operand 1']
    #allocation6 [shape = 's32[2]{0}', space=sflag, size = 0x8, scoped, tag = 'scoped memory for tpu_custom_call.1']
    #allocation7 [shape = 'u8[8192]{0}', space=vmem, size = 0x2000, scoped, tag = 'input window, operand 2, single buffered']
    #allocation8 [shape = 'u8[8192]{0}', space=vmem, size = 0x2000, scoped, tag = 'input window, operand 4, single buffered']
    #allocation9 [shape = 's32[1]{0}', space=sflag, size = 0x4, scoped, tag = 'scoped memory for tpu_custom_call.1']
    #allocation10 [shape = 'u8[8192]{0}', space=vmem, size = 0x2000, scoped, tag = 'output window, operand 0']
    %13 = vsyncpa [#allocation3], 0
    %s14 = scalar_lea.sflag [#allocation3], 1
    %15 = vsyncpa %s14, 0
    %16 = vsyncpa [#allocation6], 0
    %s17 = scalar_lea.sflag [#allocation6], 1
    %18 = vsyncpa %s17, 0
    %19 = vsyncpa [#allocation9], 0
    %20 = vsyncpa [#allocation4], 0
    %s21 = scalar_lea.sflag [#allocation4], 1
    %22 = vsyncpa %s21, 0
    loop: start=0, step=1, limit=4
    $region2: #{tpu_custom_call.1} parent=1 // loop_pre_header
      _
    $region3: #{tpu_custom_call.1} parent=1 // loop_header
      %s24 = sphi 0, %s28
      %p25 = scmp.ge.s32.totalorder %s24, 4
      %s34 = sphi 0, %s36
      %s37 = sphi 0, %s34
      %s38 = sphi 0, %s37
      %s54 = sphi 0, %s38
      %s60 = sphi 0, %s62
      %s63 = sphi 0, %s60
      %s64 = sphi 0, %s63
      %s80 = sphi 0, %s64
      %s84 = sphi 0, %s84
      %s86 = sphi 0, %s84
      %s87 = sphi 0, %s86
      %s101 = sphi 0, %s87
      %s105 = sphi 0, %s105
      %s107 = sphi 0, %s105
      %s108 = sphi 0, %s107
      %s122 = sphi 0, %s108
      %s126 = sphi 0, %s126
      %s128 = sphi 0, %s126
      %s129 = sphi 0, %s128
      %s143 = sphi 0, %s129
      %s147 = sphi 0, %s147
      %s149 = sphi 0, %s147
      %s150 = sphi 0, %s149
      %s164 = sphi 0, %s150
      %s168 = sphi 0, %s168
      %s170 = sphi 0, %s168
      %s171 = sphi 0, %s170
      %s185 = sphi 0, %s171
      %s189 = sphi 0, %s189
      %s191 = sphi 0, %s189
      %s192 = sphi 0, %s191
      %s206 = sphi 0, %s192
      %s212 = sphi 0, %s214
      %s215 = sphi 0, %s212
      %s216 = sphi 0, %s215
      %s232 = sphi 0, %s216
    $region4: #{tpu_custom_call.1} parent=1 // loop_header_branch
      %27 = sbr.rel (%p25) target = $region8
    $region5: #{tpu_custom_call.1} parent=1 // loop_body
      %s29 = ssub.s32 %s24, 1
      %s30 = ssub.s32 %s24, 2
      %s31 = sadd.s32 %s24, 1
      %s32 = ssub.s32 %s24, %s31
      %p33 = scmp.eq.s32.totalorder %s32, 0
      %s35 = sadd.s32 %s34, 1
      %s36 = scalar_select %p33, %s34, %s35
      %p39 = pneg %p33
      %p40 = scmp.eq.s32.totalorder %s24, 1
      %p41 = por %p39, %p40
      %p42 = scmp.ne.s32.totalorder %s34, %s37
      %p43 = scmp.eq.s32.totalorder %s24, 0
      %p44 = por %p42, %p43
      %p45 = scmp.ne.s32.totalorder %s34, %s37
      %p46 = scmp.eq.s32.totalorder %s29, 1
      %p47 = por %p45, %p46
      %p48 = scmp.ne.s32.totalorder %s37, %s38
      %p49 = scmp.eq.s32.totalorder %s29, 0
      %p50 = por %p48, %p49
      %p51 = scmp.ne.s32.totalorder %s37, %s38
      %p52 = scmp.eq.s32.totalorder %s30, 1
      %p53 = por %p51, %p52
      %p55 = scmp.ne.s32.totalorder %s38, %s54
      %p56 = scmp.eq.s32.totalorder %s30, 0
      %p57 = por %p55, %p56
      %s58 = ssub.s32 %s24, %s31
      %p59 = scmp.eq.s32.totalorder %s58, 0
      %s61 = sadd.s32 %s60, 1
      %s62 = scalar_select %p59, %s60, %s61
      %p65 = pneg %p59
      %p66 = scmp.eq.s32.totalorder %s24, 1
      %p67 = por %p65, %p66
      %p68 = scmp.ne.s32.totalorder %s60, %s63
      %p69 = scmp.eq.s32.totalorder %s24, 0
      %p70 = por %p68, %p69
      %p71 = scmp.ne.s32.totalorder %s60, %s63
      %p72 = scmp.eq.s32.totalorder %s29, 1
      %p73 = por %p71, %p72
      %p74 = scmp.ne.s32.totalorder %s63, %s64
      %p75 = scmp.eq.s32.totalorder %s29, 0
      %p76 = por %p74, %p75
      %p77 = scmp.ne.s32.totalorder %s63, %s64
      %p78 = scmp.eq.s32.totalorder %s30, 1
      %p79 = por %p77, %p78
      %p81 = scmp.ne.s32.totalorder %s64, %s80
      %p82 = scmp.eq.s32.totalorder %s30, 0
      %p83 = por %p81, %p82
      %s85 = sadd.s32 %s84, 1
      %p88 = scmp.eq.s32.totalorder %s24, 1
      %p89 = scmp.ne.s32.totalorder %s84, %s86
      %p90 = scmp.eq.s32.totalorder %s24, 0
      %p91 = por %p89, %p90
      %p92 = scmp.ne.s32.totalorder %s84, %s86
      %p93 = scmp.eq.s32.totalorder %s29, 1
      %p94 = por %p92, %p93
      %p95 = scmp.ne.s32.totalorder %s86, %s87
      %p96 = scmp.eq.s32.totalorder %s29, 0
      %p97 = por %p95, %p96
      %p98 = scmp.ne.s32.totalorder %s86, %s87
      %p99 = scmp.eq.s32.totalorder %s30, 1
      %p100 = por %p98, %p99
      %p102 = scmp.ne.s32.totalorder %s87, %s101
      %p103 = scmp.eq.s32.totalorder %s30, 0
      %p104 = por %p102, %p103
      %s106 = sadd.s32 %s105, 1
      %p109 = scmp.eq.s32.totalorder %s24, 1
      %p110 = scmp.ne.s32.totalorder %s105, %s107
      %p111 = scmp.eq.s32.totalorder %s24, 0
      %p112 = por %p110, %p111
      %p113 = scmp.ne.s32.totalorder %s105, %s107
      %p114 = scmp.eq.s32.totalorder %s29, 1
      %p115 = por %p113, %p114
      %p116 = scmp.ne.s32.totalorder %s107, %s108
      %p117 = scmp.eq.s32.totalorder %s29, 0
      %p118 = por %p116, %p117
      %p119 = scmp.ne.s32.totalorder %s107, %s108
      %p120 = scmp.eq.s32.totalorder %s30, 1
      %p121 = por %p119, %p120
      %p123 = scmp.ne.s32.totalorder %s108, %s122
      %p124 = scmp.eq.s32.totalorder %s30, 0
      %p125 = por %p123, %p124
      %s127 = sadd.s32 %s126, 1
      %p130 = scmp.eq.s32.totalorder %s24, 1
      %p131 = scmp.ne.s32.totalorder %s126, %s128
      %p132 = scmp.eq.s32.totalorder %s24, 0
      %p133 = por %p131, %p132
      %p134 = scmp.ne.s32.totalorder %s126, %s128
      %p135 = scmp.eq.s32.totalorder %s29, 1
      %p136 = por %p134, %p135
      %p137 = scmp.ne.s32.totalorder %s128, %s129
      %p138 = scmp.eq.s32.totalorder %s29, 0
      %p139 = por %p137, %p138
      %p140 = scmp.ne.s32.totalorder %s128, %s129
      %p141 = scmp.eq.s32.totalorder %s30, 1
      %p142 = por %p140, %p141
      %p144 = scmp.ne.s32.totalorder %s129, %s143
      %p145 = scmp.eq.s32.totalorder %s30, 0
      %p146 = por %p144, %p145
      %s148 = sadd.s32 %s147, 1
      %p151 = scmp.eq.s32.totalorder %s24, 1
      %p152 = scmp.ne.s32.totalorder %s147, %s149
      %p153 = scmp.eq.s32.totalorder %s24, 0
      %p154 = por %p152, %p153
      %p155 = scmp.ne.s32.totalorder %s147, %s149
      %p156 = scmp.eq.s32.totalorder %s29, 1
      %p157 = por %p155, %p156
      %p158 = scmp.ne.s32.totalorder %s149, %s150
      %p159 = scmp.eq.s32.totalorder %s29, 0
      %p160 = por %p158, %p159
      %p161 = scmp.ne.s32.totalorder %s149, %s150
      %p162 = scmp.eq.s32.totalorder %s30, 1
      %p163 = por %p161, %p162
      %p165 = scmp.ne.s32.totalorder %s150, %s164
      %p166 = scmp.eq.s32.totalorder %s30, 0
      %p167 = por %p165, %p166
      %s169 = sadd.s32 %s168, 1
      %p172 = scmp.eq.s32.totalorder %s24, 1
      %p173 = scmp.ne.s32.totalorder %s168, %s170
      %p174 = scmp.eq.s32.totalorder %s24, 0
      %p175 = por %p173, %p174
      %p176 = scmp.ne.s32.totalorder %s168, %s170
      %p177 = scmp.eq.s32.totalorder %s29, 1
      %p178 = por %p176, %p177
      %p179 = scmp.ne.s32.totalorder %s170, %s171
      %p180 = scmp.eq.s32.totalorder %s29, 0
      %p181 = por %p179, %p180
      %p182 = scmp.ne.s32.totalorder %s170, %s171
      %p183 = scmp.eq.s32.totalorder %s30, 1
      %p184 = por %p182, %p183
      %p186 = scmp.ne.s32.totalorder %s171, %s185
      %p187 = scmp.eq.s32.totalorder %s30, 0
      %p188 = por %p186, %p187
      %s190 = sadd.s32 %s189, 1
      %p193 = scmp.eq.s32.totalorder %s24, 1
      %p194 = scmp.ne.s32.totalorder %s189, %s191
      %p195 = scmp.eq.s32.totalorder %s24, 0
      %p196 = por %p194, %p195
      %p197 = scmp.ne.s32.totalorder %s189, %s191
      %p198 = scmp.eq.s32.totalorder %s29, 1
      %p199 = por %p197, %p198
      %p200 = scmp.ne.s32.totalorder %s191, %s192
      %p201 = scmp.eq.s32.totalorder %s29, 0
      %p202 = por %p200, %p201
      %p203 = scmp.ne.s32.totalorder %s191, %s192
      %p204 = scmp.eq.s32.totalorder %s30, 1
      %p205 = por %p203, %p204
      %p207 = scmp.ne.s32.totalorder %s192, %s206
      %p208 = scmp.eq.s32.totalorder %s30, 0
      %p209 = por %p207, %p208
      %s210 = ssub.s32 %s24, %s31
      %p211 = scmp.eq.s32.totalorder %s210, 0
      %s213 = sadd.s32 %s212, 1
      %s214 = scalar_select %p211, %s212, %s213
      %p217 = pneg %p211
      %p218 = scmp.eq.s32.totalorder %s24, 1
      %p219 = por %p217, %p218
      %p220 = scmp.ne.s32.totalorder %s212, %s215
      %p221 = scmp.eq.s32.totalorder %s24, 0
      %p222 = por %p220, %p221
      %p223 = scmp.ne.s32.totalorder %s212, %s215
      %p224 = scmp.eq.s32.totalorder %s29, 1
      %p225 = por %p223, %p224
      %p226 = scmp.ne.s32.totalorder %s215, %s216
      %p227 = scmp.eq.s32.totalorder %s29, 0
      %p228 = por %p226, %p227
      %p229 = scmp.ne.s32.totalorder %s215, %s216
      %p230 = scmp.eq.s32.totalorder %s30, 1
      %p231 = por %p229, %p230
      %p233 = scmp.ne.s32.totalorder %s216, %s232
      %p234 = scmp.eq.s32.totalorder %s30, 0
      %p235 = por %p233, %p234
      %p236 = scmp.le.s32.totalorder 1, %s24
      %p237 = scmp.lt.s32.totalorder %s24, 3
      %p238 = pnand %p236, %p237
      %p239 = pneg %p238
      // Predicated region
      $region9: #{tpu_custom_call.1} parent=5 // pred_check
        _
      $region10: #{tpu_custom_call.1} parent=5 // pred_check_branch
        %241 = sbr.rel (%p238) target = $region12
      $region11: #{tpu_custom_call.1} parent=5 // pred_region
        %s242 = ssub.s32 %s24, 1
        // Predicated region
        $region13: #{tpu_custom_call.1} parent=11 // pred_check
          %p243 = pneg %p97
        $region14: #{tpu_custom_call.1} parent=11 // pred_check_branch
          %245 = sbr.rel (%p243) target = $region16
        $region15: #{tpu_custom_call.1} parent=11 // pred_region
          %s247 = ssub.s32 256, 256
          %248 = vsyncadd [#allocation6], %s247
          %s249 = sshll.u32 [#allocation7], 4
          %s250 = int_to_ptr.vmem [resolvable:$true] %s249
          %255 = dma.hbm_to_vmem [thread:$0]  %s2, 256, %s250, [#allocation6], 64, 64, 4
        $region16: #{tpu_custom_call.1} parent=11 // pred_fallthru
          _
        // Predicated region
        $region17: #{tpu_custom_call.1} parent=11 // pred_check
          %p256 = pneg %p118
        $region18: #{tpu_custom_call.1} parent=11 // pred_check_branch
          %258 = sbr.rel (%p256) target = $region20
        $region19: #{tpu_custom_call.1} parent=11 // pred_region
          _
        $region20: #{tpu_custom_call.1} parent=11 // pred_fallthru
          _
        // Predicated region
        $region21: #{tpu_custom_call.1} parent=11 // pred_check
          %p259 = pneg %p139
        $region22: #{tpu_custom_call.1} parent=11 // pred_check_branch
          %261 = sbr.rel (%p259) target = $region24
        $region23: #{tpu_custom_call.1} parent=11 // pred_region
          %s263 = ssub.s32 256, 256
          %264 = vsyncadd [#allocation9], %s263
          %s265 = sshll.u32 [#allocation8], 4
          %s266 = int_to_ptr.vmem [resolvable:$true] %s265
          %271 = dma.hbm_to_vmem [thread:$0]  %s4, 256, %s266, [#allocation9], 64, 64, 4
        $region24: #{tpu_custom_call.1} parent=11 // pred_fallthru
          _
        // Predicated region
        $region25: #{tpu_custom_call.1} parent=11 // pred_check
          %p272 = pneg %p160
        $region26: #{tpu_custom_call.1} parent=11 // pred_check_branch
          %274 = sbr.rel (%p272) target = $region28
        $region27: #{tpu_custom_call.1} parent=11 // pred_region
          _
        $region28: #{tpu_custom_call.1} parent=11 // pred_fallthru
          _
        // Predicated region
        $region29: #{tpu_custom_call.1} parent=11 // pred_check
          %p275 = pneg %p181
        $region30: #{tpu_custom_call.1} parent=11 // pred_check_branch
          %277 = sbr.rel (%p275) target = $region32
        $region31: #{tpu_custom_call.1} parent=11 // pred_region
          _
        $region32: #{tpu_custom_call.1} parent=11 // pred_fallthru
          _
        // Predicated region
        $region33: #{tpu_custom_call.1} parent=11 // pred_check
          %p278 = pneg %p202
        $region34: #{tpu_custom_call.1} parent=11 // pred_check_branch
          %280 = sbr.rel (%p278) target = $region36
        $region35: #{tpu_custom_call.1} parent=11 // pred_region
          _
        $region36: #{tpu_custom_call.1} parent=11 // pred_fallthru
          _
      $region12: #{tpu_custom_call.1} parent=5 // pred_fallthru
        _
      %p281 = scmp.lt.s32.totalorder %s24, 2
      // Predicated region
      $region37: #{tpu_custom_call.1} parent=5 // pred_check
        %p282 = pneg %p281
      $region38: #{tpu_custom_call.1} parent=5 // pred_check_branch
        %284 = sbr.rel (%p282) target = $region40
      $region39: #{tpu_custom_call.1} parent=5 // pred_region
        // Predicated region
        $region41: #{tpu_custom_call.1} parent=39 // pred_check
          %p285 = pneg %p44
        $region42: #{tpu_custom_call.1} parent=39 // pred_check_branch
          %287 = sbr.rel (%p285) target = $region44
        $region43: #{tpu_custom_call.1} parent=39 // pred_region
          %s288 = sand.u32 %s34, 1
          %s289 = scalar_lea.sflag [#allocation3], %s288
          %s290 = sand.u32 %s34, 1
          %s291 = smul.addr %s290, 8
          %s292 = scalar_lea.vmem [#allocation2], %s291
          %s294 = ssub.s32 128, 128
          %295 = vsyncadd %s289, %s294
          %s296 = smul.addr %s24, 128
          %s297 = scalar_lea.hbm %s0, %s296
          %s299 = sshll.u32 %s292, 4
          %s300 = int_to_ptr.vmem [resolvable:$true] %s299
          %302 = dma.hbm_to_vmem [thread:$0]  %s297, 128, %s300, %s289
        $region44: #{tpu_custom_call.1} parent=39 // pred_fallthru
          _
        // Predicated region
        $region45: #{tpu_custom_call.1} parent=39 // pred_check
          %p303 = pneg %p70
        $region46: #{tpu_custom_call.1} parent=39 // pred_check_branch
          %305 = sbr.rel (%p303) target = $region48
        $region47: #{tpu_custom_call.1} parent=39 // pred_region
          %s306 = sand.u32 %s24, 1
          %s307 = scalar_lea.sflag [#allocation6], %s306
          %s308 = sand.u32 %s60, 1
          %s309 = smul.addr %s308, 8
          %s310 = scalar_lea.vmem [#allocation5], %s309
          %s312 = ssub.s32 128, 128
          %313 = vsyncadd %s307, %s312
          %s314 = smul.addr %s24, 128
          %s315 = scalar_lea.hbm %s1, %s314
          %s317 = sshll.u32 %s310, 4
          %s318 = int_to_ptr.vmem [resolvable:$true] %s317
          %320 = dma.hbm_to_vmem [thread:$0]  %s315, 128, %s318, %s307
        $region48: #{tpu_custom_call.1} parent=39 // pred_fallthru
          _
      $region40: #{tpu_custom_call.1} parent=5 // pred_fallthru
        _
      %p321 = scmp.le.s32.totalorder 1, %s24
      %p322 = scmp.lt.s32.totalorder %s24, 3
      %p323 = pnand %p321, %p322
      %p324 = pneg %p323
      // Predicated region
      $region49: #{tpu_custom_call.1} parent=5 // pred_check
        _
      $region50: #{tpu_custom_call.1} parent=5 // pred_check_branch
        %326 = sbr.rel (%p323) target = $region52
      $region51: #{tpu_custom_call.1} parent=5 // pred_region
        %s327 = ssub.s32 %s24, 1
        %s328 = sand.u32 %s37, 1
        %s329 = scalar_lea.sflag [#allocation3], %s328
        %s330 = sand.u32 %s37, 1
        %s331 = smul.addr %s330, 8
        %s332 = scalar_lea.vmem [#allocation2], %s331
        // Predicated region
        $region53: #{tpu_custom_call.1} parent=51 // pred_check
          %p333 = pneg %p50
        $region54: #{tpu_custom_call.1} parent=51 // pred_check_branch
          %335 = sbr.rel (%p333) target = $region56
        $region55: #{tpu_custom_call.1} parent=51 // pred_region
          %336 = dma.done %s329, 128
        $region56: #{tpu_custom_call.1} parent=51 // pred_fallthru
          _
        %s337 = sand.u32 %s29, 1
        %s338 = scalar_lea.sflag [#allocation6], %s337
        %s339 = sand.u32 %s63, 1
        %s340 = smul.addr %s339, 8
        %s341 = scalar_lea.vmem [#allocation5], %s340
        // Predicated region
        $region57: #{tpu_custom_call.1} parent=51 // pred_check
          %p342 = pneg %p76
        $region58: #{tpu_custom_call.1} parent=51 // pred_check_branch
          %344 = sbr.rel (%p342) target = $region60
        $region59: #{tpu_custom_call.1} parent=51 // pred_region
          %345 = dma.done %s338, 128
        $region60: #{tpu_custom_call.1} parent=51 // pred_fallthru
          _
        // Predicated region
        $region61: #{tpu_custom_call.1} parent=51 // pred_check
          %p346 = pneg %p97
        $region62: #{tpu_custom_call.1} parent=51 // pred_check_branch
          %348 = sbr.rel (%p346) target = $region64
        $region63: #{tpu_custom_call.1} parent=51 // pred_region
          %349 = dma.done [#allocation6], 256
        $region64: #{tpu_custom_call.1} parent=51 // pred_fallthru
          _
        // Predicated region
        $region65: #{tpu_custom_call.1} parent=51 // pred_check
          %p350 = pneg %p139
        $region66: #{tpu_custom_call.1} parent=51 // pred_check_branch
          %352 = sbr.rel (%p350) target = $region68
        $region67: #{tpu_custom_call.1} parent=51 // pred_region
          %353 = dma.done [#allocation9], 256
        $region68: #{tpu_custom_call.1} parent=51 // pred_fallthru
          _
        %s354 = sand.u32 %s37, 1
        %s355 = scalar_lea.sflag [#allocation3], %s354
        %s356 = sand.u32 %s37, 1
        %s357 = smul.addr %s356, 8
        %s358 = scalar_lea.vmem [#allocation2], %s357
        %p359 = pneg %p50
        %p360 = pneg %p47
        %s361 = sand.u32 %s29, 1
        %s362 = scalar_lea.sflag [#allocation6], %s361
        %s363 = sand.u32 %s63, 1
        %s364 = smul.addr %s363, 8
        %s365 = scalar_lea.vmem [#allocation5], %s364
        %p366 = pneg %p76
        %p367 = pneg %p73
        %p368 = pneg %p97
        %p369 = pneg %p94
        %p370 = pneg %p118
        %p371 = pneg %p115
        %p372 = pneg %p139
        %p373 = pneg %p136
        %p374 = pneg %p160
        %p375 = pneg %p157
        %p376 = pneg %p181
        %p377 = pneg %p178
        %p378 = pneg %p202
        %p379 = pneg %p199
        %p380 = pneg %p228
        %p381 = pneg %p225
        %s382 = sand.u32 %s215, 1
        %s383 = scalar_lea.sflag [#allocation4], %s382
        %s384 = sand.u32 %s215, 1
        %s385 = smul.addr %s384, 8
        %s386 = scalar_lea.vmem [#allocation10], %s385
        %v388 = vld [vmem:[%s332] sm:$0xff]
        %v389 = vpack.c.bf16 %v388, %v388
        %v390 = vld [vmem:[#allocation7] sm:$0xf]
        %v391 = vld [vmem:[#allocation7 + $0x4] sm:$0xf]
        %v392 = vld [vmem:[#allocation7 + $0x8] sm:$0xf]
        %v393 = vld [vmem:[#allocation7 + $0xc] sm:$0xf]
        %v394 = vld [vmem:[%s3] sm:$0x1]
        %v396 = vlaneseq
        %v397 = vshrl.u32 %v396, 7
        %v398 = vsub.s32 0, %v397
        %v399 = vrot.slane %v394, %v398
        %v405 = vunpack.c.l.b16 %v390
        %v406 = vunpack.c.l.b16 %v391
        %v407 = vunpack.c.l.b16 %v392
        %v408 = vunpack.c.l.b16 %v393
        %v409 = vpack.c.b16 %v406, %v405
        %v410 = vpack.c.b16 %v408, %v407
        %vm413 = vcmask 261120
        %v415 = vsel %vm413, %v389, 0
        %417 = vmatprep.subr.bf16.mxu0 0
        %418 = vmatpush1.bf16.msra.mxu0 %v409
        %419 = vmatprep.subr.bf16.mxu0 0
        %420 = vmatpush1.bf16.msra.mxu0 %v410
        %421 = vmatprep.subr.bf16.mxu0 0
        %422 = vmatpush1.bf16.msra.mxu0 0
        %423 = vmatprep.subr.bf16.mxu0 0
        %424 = vmatpush1.bf16.msra.mxu0 0
        %425 = vmatprep.subr.bf16.mxu0 0
        %426 = vmatpush1.bf16.msra.mxu0 0
        %427 = vmatprep.subr.bf16.mxu0 0
        %428 = vmatpush1.bf16.msra.mxu0 0
        %429 = vmatprep.subr.bf16.mxu0 0
        %430 = vmatpush1.bf16.msra.mxu0 0
        %431 = vmatprep.subr.bf16.mxu0 0
        %432 = vmatpush1.bf16.msra.mxu0 0
        %433 = vmatprep.subr.bf16.mxu0 0
        %434 = vmatpush1.bf16.msra.mxu0 0
        %435 = vmatprep.subr.bf16.mxu0 0
        %436 = vmatpush1.bf16.msra.mxu0 0
        %437 = vmatprep.subr.bf16.mxu0 0
        %438 = vmatpush1.bf16.msra.mxu0 0
        %439 = vmatprep.subr.bf16.mxu0 0
        %440 = vmatpush1.bf16.msra.mxu0 0
        %441 = vmatprep.subr.bf16.mxu0 0
        %442 = vmatpush1.bf16.msra.mxu0 0
        %443 = vmatprep.subr.bf16.mxu0 0
        %444 = vmatpush1.bf16.msra.mxu0 0
        %445 = vmatprep.subr.bf16.mxu0 0
        %446 = vmatpush1.bf16.msra.mxu0 0
        %447 = vmatprep.subr.bf16.mxu0 0
        %448 = vmatpush1.bf16.msra.mxu0 0
        %449 = vmatprep.mubr.bf16.mxu0 0
        %450 = vmatmul.mubr.bf16.gmra.mrb[0].mxu0 %v415
        %v451 = vpop.f32.mrb[0].mxu0
        %v452 = vadd.f32 %v399, %v451
        %v453 = vpop.f32.mrb[0].mxu0
        %v454 = vpop.f32.mrb[0].mxu0
        %v455 = vpop.f32.mrb[0].mxu0
        %456 = vdwg.mxu0
        %v457 = vld [vmem:[%s341] sm:$0xff]
        %v458 = vpack.c.bf16 %v452, %v452
        %460 = vrot.lane.b32.xlu0 %v458, 96
        %v461 = vpop.permute.xlu0 %460
        %vm462 = vcmask 64512
        %v464 = vsel %vm462, %v458, 0
        %v467 = vsel %vm462, %v461, 0
        %469 = vmatprep.subr.bf16.mxu0 0
        %470 = vmatpush1.bf16.xpose.msra.mxu0 %v467
        %471 = vmatprep.subr.bf16.mxu0 0
        %472 = vmatpush1.bf16.xpose.msra.mxu0 0
        %473 = vmatprep.subr.bf16.mxu0 0
        %474 = vmatpush1.bf16.xpose.msra.mxu0 0
        %475 = vmatprep.subr.bf16.mxu0 0
        %476 = vmatpush1.bf16.xpose.msra.mxu0 0
        %477 = vmatprep.subr.bf16.mxu0 0
        %478 = vmatpush1.bf16.xpose.msra.mxu0 0
        %479 = vmatprep.subr.bf16.mxu0 0
        %480 = vmatpush1.bf16.xpose.msra.mxu0 0
        %481 = vmatprep.subr.bf16.mxu0 0
        %482 = vmatpush1.bf16.xpose.msra.mxu0 0
        %483 = vmatprep.subr.bf16.mxu0 0
        %484 = vmatpush1.bf16.xpose.msra.mxu0 0
        %485 = vmatprep.subr.bf16.mxu0 0
        %486 = vmatpush1.bf16.xpose.msra.mxu0 0
        %487 = vmatprep.subr.bf16.mxu0 0
        %488 = vmatpush1.bf16.xpose.msra.mxu0 0
        %489 = vmatprep.subr.bf16.mxu0 0
        %490 = vmatpush1.bf16.xpose.msra.mxu0 0
        %491 = vmatprep.subr.bf16.mxu0 0
        %492 = vmatpush1.bf16.xpose.msra.mxu0 0
        %493 = vmatprep.subr.bf16.mxu0 0
        %494 = vmatpush1.bf16.xpose.msra.mxu0 0
        %495 = vmatprep.subr.bf16.mxu0 0
        %496 = vmatpush1.bf16.xpose.msra.mxu0 0
        %497 = vmatprep.subr.bf16.mxu0 0
        %498 = vmatpush1.bf16.xpose.msra.mxu0 0
        %499 = vmatprep.subr.bf16.mxu0 0
        %500 = vmatpush1.bf16.xpose.msra.mxu0 0
        %501 = vmatprep.mubr.bf16.mxu0 0
        %502 = vmatmul.mubr.bf16.gmra.mrb[0].mxu0 %v464
        %v503 = vpop.f32.mrb[0].mxu0
        %v504 = vadd.f32 0.0, %v503
        %v505 = vpop.f32.mrb[0].mxu0
        %v506 = vpop.f32.mrb[0].mxu0
        %v507 = vpop.f32.mrb[0].mxu0
        %508 = vdwg.mxu0
        %v509 = vmul.f32 %v504, 0.35355338
        %vm510 = vcmp.gt.s32.totalorder %v457, 0
        %v511 = vsel %vm510, -1e+18, %v509
        %v512 = vsel %vm462, %v511, -inf
        %513 = vmax.xlane.f32.xlu0 %v512
        %v514 = vpop.xlane.xlu0 %513
        %v515 = vsub.f32 %v511, %v514
        %v516 = vmul.f32 %v515, 1.442695
        %v517 = vpow.pop %v516
        %v518 = vsel %vm462, %v517, 0.0
        %519 = vadd.xlane.f32.xlu0 %v518
        %v520 = vpop.xlane.xlu0 %519
        %v521 = vrcp.pop %v520
        %v522 = vmul.f32 %v517, %v521
        %v523 = vpack.c.bf16 %v522, %v522
        %524 = vrot.lane.b32.xlu0 %v458, 64
        %v525 = vpop.permute.xlu0 %524
        %v527 = vsel %vm462, %v523, 0
        %vm529 = vcmask 1043456
        %v531 = vsel %vm529, %v525, 0
        %533 = vmatprep.subr.bf16.mxu0 0
        %534 = vmatpush1.bf16.msra.mxu0 %v531
        %535 = vmatprep.subr.bf16.mxu0 0
        %536 = vmatpush1.bf16.msra.mxu0 0
        %537 = vmatprep.subr.bf16.mxu0 0
        %538 = vmatpush1.bf16.msra.mxu0 0
        %539 = vmatprep.subr.bf16.mxu0 0
        %540 = vmatpush1.bf16.msra.mxu0 0
        %541 = vmatprep.subr.bf16.mxu0 0
        %542 = vmatpush1.bf16.msra.mxu0 0
        %543 = vmatprep.subr.bf16.mxu0 0
        %544 = vmatpush1.bf16.msra.mxu0 0
        %545 = vmatprep.subr.bf16.mxu0 0
        %546 = vmatpush1.bf16.msra.mxu0 0
        %547 = vmatprep.subr.bf16.mxu0 0
        %548 = vmatpush1.bf16.msra.mxu0 0
        %549 = vmatprep.subr.bf16.mxu0 0
        %550 = vmatpush1.bf16.msra.mxu0 0
        %551 = vmatprep.subr.bf16.mxu0 0
        %552 = vmatpush1.bf16.msra.mxu0 0
        %553 = vmatprep.subr.bf16.mxu0 0
        %554 = vmatpush1.bf16.msra.mxu0 0
        %555 = vmatprep.subr.bf16.mxu0 0
        %556 = vmatpush1.bf16.msra.mxu0 0
        %557 = vmatprep.subr.bf16.mxu0 0
        %558 = vmatpush1.bf16.msra.mxu0 0
        %559 = vmatprep.subr.bf16.mxu0 0
        %560 = vmatpush1.bf16.msra.mxu0 0
        %561 = vmatprep.subr.bf16.mxu0 0
        %562 = vmatpush1.bf16.msra.mxu0 0
        %563 = vmatprep.subr.bf16.mxu0 0
        %564 = vmatpush1.bf16.msra.mxu0 0
        %565 = vmatprep.mubr.bf16.mxu0 0
        %566 = vmatmul.mubr.bf16.gmra.mrb[0].mxu0 %v527
        %v567 = vpop.f32.mrb[0].mxu0
        %v568 = vadd.f32 0.0, %v567
        %v569 = vpop.f32.mrb[0].mxu0
        %v570 = vpop.f32.mrb[0].mxu0
        %v571 = vpop.f32.mrb[0].mxu0
        %572 = vdwg.mxu0
        %573 = vrot.lane.b32.xlu0 %v458, 120
        %v574 = vpop.permute.xlu0 %573
        %575 = vrot.lane.b32.xlu0 %v458, 88
        %v576 = vpop.permute.xlu0 %575
        %v578 = vsel %vm462, %v574, 0
        %v581 = vsel %vm462, %v576, 0
        %583 = vmatprep.subr.bf16.mxu0 0
        %584 = vmatpush1.bf16.xpose.msra.mxu0 %v581
        %585 = vmatprep.subr.bf16.mxu0 0
        %586 = vmatpush1.bf16.xpose.msra.mxu0 0
        %587 = vmatprep.subr.bf16.mxu0 0
        %588 = vmatpush1.bf16.xpose.msra.mxu0 0
        %589 = vmatprep.subr.bf16.mxu0 0
        %590 = vmatpush1.bf16.xpose.msra.mxu0 0
        %591 = vmatprep.subr.bf16.mxu0 0
        %592 = vmatpush1.bf16.xpose.msra.mxu0 0
        %593 = vmatprep.subr.bf16.mxu0 0
        %594 = vmatpush1.bf16.xpose.msra.mxu0 0
        %595 = vmatprep.subr.bf16.mxu0 0
        %596 = vmatpush1.bf16.xpose.msra.mxu0 0
        %597 = vmatprep.subr.bf16.mxu0 0
        %598 = vmatpush1.bf16.xpose.msra.mxu0 0
        %599 = vmatprep.subr.bf16.mxu0 0
        %600 = vmatpush1.bf16.xpose.msra.mxu0 0
        %601 = vmatprep.subr.bf16.mxu0 0
        %602 = vmatpush1.bf16.xpose.msra.mxu0 0
        %603 = vmatprep.subr.bf16.mxu0 0
        %604 = vmatpush1.bf16.xpose.msra.mxu0 0
        %605 = vmatprep.subr.bf16.mxu0 0
        %606 = vmatpush1.bf16.xpose.msra.mxu0 0
        %607 = vmatprep.subr.bf16.mxu0 0
        %608 = vmatpush1.bf16.xpose.msra.mxu0 0
        %609 = vmatprep.subr.bf16.mxu0 0
        %610 = vmatpush1.bf16.xpose.msra.mxu0 0
        %611 = vmatprep.subr.bf16.mxu0 0
        %612 = vmatpush1.bf16.xpose.msra.mxu0 0
        %613 = vmatprep.subr.bf16.mxu0 0
        %614 = vmatpush1.bf16.xpose.msra.mxu0 0
        %615 = vmatprep.mubr.bf16.mxu0 0
        %616 = vmatmul.mubr.bf16.gmra.mrb[0].mxu0 %v578
        %v617 = vpop.f32.mrb[0].mxu0
        %v618 = vadd.f32 0.0, %v617
        %v619 = vpop.f32.mrb[0].mxu0
        %v620 = vpop.f32.mrb[0].mxu0
        %v621 = vpop.f32.mrb[0].mxu0
        %622 = vdwg.mxu0
        %v623 = vmul.f32 %v618, 0.35355338
        %v624 = vsel %vm510, -1e+18, %v623
        %v625 = vsel %vm462, %v624, -inf
        %626 = vmax.xlane.f32.xlu0 %v625
        %v627 = vpop.xlane.xlu0 %626
        %v628 = vsub.f32 %v624, %v627
        %v629 = vmul.f32 %v628, 1.442695
        %v630 = vpow.pop %v629
        %v631 = vsel %vm462, %v630, 0.0
        %632 = vadd.xlane.f32.xlu0 %v631
        %v633 = vpop.xlane.xlu0 %632
        %v634 = vrcp.pop %v633
        %v635 = vmul.f32 %v630, %v634
        %v636 = vpack.c.bf16 %v635, %v635
        %637 = vrot.lane.b32.xlu0 %v458, 56
        %v638 = vpop.permute.xlu0 %637
        %v640 = vsel %vm462, %v636, 0
        %v643 = vsel %vm529, %v638, 0
        %645 = vmatprep.subr.bf16.mxu0 0
        %646 = vmatpush1.bf16.msra.mxu0 %v643
        %647 = vmatprep.subr.bf16.mxu0 0
        %648 = vmatpush1.bf16.msra.mxu0 0
        %649 = vmatprep.subr.bf16.mxu0 0
        %650 = vmatpush1.bf16.msra.mxu0 0
        %651 = vmatprep.subr.bf16.mxu0 0
        %652 = vmatpush1.bf16.msra.mxu0 0
        %653 = vmatprep.subr.bf16.mxu0 0
        %654 = vmatpush1.bf16.msra.mxu0 0
        %655 = vmatprep.subr.bf16.mxu0 0
        %656 = vmatpush1.bf16.msra.mxu0 0
        %657 = vmatprep.subr.bf16.mxu0 0
        %658 = vmatpush1.bf16.msra.mxu0 0
        %659 = vmatprep.subr.bf16.mxu0 0
        %660 = vmatpush1.bf16.msra.mxu0 0
        %661 = vmatprep.subr.bf16.mxu0 0
        %662 = vmatpush1.bf16.msra.mxu0 0
        %663 = vmatprep.subr.bf16.mxu0 0
        %664 = vmatpush1.bf16.msra.mxu0 0
        %665 = vmatprep.subr.bf16.mxu0 0
        %666 = vmatpush1.bf16.msra.mxu0 0
        %667 = vmatprep.subr.bf16.mxu0 0
        %668 = vmatpush1.bf16.msra.mxu0 0
        %669 = vmatprep.subr.bf16.mxu0 0
        %670 = vmatpush1.bf16.msra.mxu0 0
        %671 = vmatprep.subr.bf16.mxu0 0
        %672 = vmatpush1.bf16.msra.mxu0 0
        %673 = vmatprep.subr.bf16.mxu0 0
        %674 = vmatpush1.bf16.msra.mxu0 0
        %675 = vmatprep.subr.bf16.mxu0 0
        %676 = vmatpush1.bf16.msra.mxu0 0
        %677 = vmatprep.mubr.bf16.mxu0 0
        %678 = vmatmul.mubr.bf16.gmra.mrb[0].mxu0 %v640
        %v679 = vpop.f32.mrb[0].mxu0
        %v680 = vadd.f32 0.0, %v679
        %v681 = vpop.f32.mrb[0].mxu0
        %v682 = vpop.f32.mrb[0].mxu0
        %v683 = vpop.f32.mrb[0].mxu0
        %684 = vdwg.mxu0
        %685 = vrot.lane.b32.xlu0 %v458, 112
        %v686 = vpop.permute.xlu0 %685
        %687 = vrot.lane.b32.xlu0 %v458, 80
        %v688 = vpop.permute.xlu0 %687
        %v690 = vsel %vm462, %v686, 0
        %v693 = vsel %vm462, %v688, 0
        %695 = vmatprep.subr.bf16.mxu0 0
        %696 = vmatpush1.bf16.xpose.msra.mxu0 %v693
        %697 = vmatprep.subr.bf16.mxu0 0
        %698 = vmatpush1.bf16.xpose.msra.mxu0 0
        %699 = vmatprep.subr.bf16.mxu0 0
        %700 = vmatpush1.bf16.xpose.msra.mxu0 0
        %701 = vmatprep.subr.bf16.mxu0 0
        %702 = vmatpush1.bf16.xpose.msra.mxu0 0
        %703 = vmatprep.subr.bf16.mxu0 0
        %704 = vmatpush1.bf16.xpose.msra.mxu0 0
        %705 = vmatprep.subr.bf16.mxu0 0
        %706 = vmatpush1.bf16.xpose.msra.mxu0 0
        %707 = vmatprep.subr.bf16.mxu0 0
        %708 = vmatpush1.bf16.xpose.msra.mxu0 0
        %709 = vmatprep.subr.bf16.mxu0 0
        %710 = vmatpush1.bf16.xpose.msra.mxu0 0
        %711 = vmatprep.subr.bf16.mxu0 0
        %712 = vmatpush1.bf16.xpose.msra.mxu0 0
        %713 = vmatprep.subr.bf16.mxu0 0
        %714 = vmatpush1.bf16.xpose.msra.mxu0 0
        %715 = vmatprep.subr.bf16.mxu0 0
        %716 = vmatpush1.bf16.xpose.msra.mxu0 0
        %717 = vmatprep.subr.bf16.mxu0 0
        %718 = vmatpush1.bf16.xpose.msra.mxu0 0
        %719 = vmatprep.subr.bf16.mxu0 0
        %720 = vmatpush1.bf16.xpose.msra.mxu0 0
        %721 = vmatprep.subr.bf16.mxu0 0
        %722 = vmatpush1.bf16.xpose.msra.mxu0 0
        %723 = vmatprep.subr.bf16.mxu0 0
        %724 = vmatpush1.bf16.xpose.msra.mxu0 0
        %725 = vmatprep.subr.bf16.mxu0 0
        %726 = vmatpush1.bf16.xpose.msra.mxu0 0
        %727 = vmatprep.mubr.bf16.mxu0 0
        %728 = vmatmul.mubr.bf16.gmra.mrb[0].mxu0 %v690
        %v729 = vpop.f32.mrb[0].mxu0
        %v730 = vadd.f32 0.0, %v729
        %v731 = vpop.f32.mrb[0].mxu0
        %v732 = vpop.f32.mrb[0].mxu0
        %v733 = vpop.f32.mrb[0].mxu0
        %734 = vdwg.mxu0
        %v735 = vmul.f32 %v730, 0.35355338
        %v736 = vsel %vm510, -1e+18, %v735
        %v737 = vsel %vm462, %v736, -inf
        %738 = vmax.xlane.f32.xlu0 %v737
        %v739 = vpop.xlane.xlu0 %738
        %v740 = vsub.f32 %v736, %v739
        %v741 = vmul.f32 %v740, 1.442695
        %v742 = vpow.pop %v741
        %v743 = vsel %vm462, %v742, 0.0
        %744 = vadd.xlane.f32.xlu0 %v743
        %v745 = vpop.xlane.xlu0 %744
        %v746 = vrcp.pop %v745
        %v747 = vmul.f32 %v742, %v746
        %v748 = vpack.c.bf16 %v747, %v747
        %749 = vrot.lane.b32.xlu0 %v458, 48
        %v750 = vpop.permute.xlu0 %749
        %v752 = vsel %vm462, %v748, 0
        %v755 = vsel %vm529, %v750, 0
        %757 = vmatprep.subr.bf16.mxu0 0
        %758 = vmatpush1.bf16.msra.mxu0 %v755
        %759 = vmatprep.subr.bf16.mxu0 0
        %760 = vmatpush1.bf16.msra.mxu0 0
        %761 = vmatprep.subr.bf16.mxu0 0
        %762 = vmatpush1.bf16.msra.mxu0 0
        %763 = vmatprep.subr.bf16.mxu0 0
        %764 = vmatpush1.bf16.msra.mxu0 0
        %765 = vmatprep.subr.bf16.mxu0 0
        %766 = vmatpush1.bf16.msra.mxu0 0
        %767 = vmatprep.subr.bf16.mxu0 0
        %768 = vmatpush1.bf16.msra.mxu0 0
        %769 = vmatprep.subr.bf16.mxu0 0
        %770 = vmatpush1.bf16.msra.mxu0 0
        %771 = vmatprep.subr.bf16.mxu0 0
        %772 = vmatpush1.bf16.msra.mxu0 0
        %773 = vmatprep.subr.bf16.mxu0 0
        %774 = vmatpush1.bf16.msra.mxu0 0
        %775 = vmatprep.subr.bf16.mxu0 0
        %776 = vmatpush1.bf16.msra.mxu0 0
        %777 = vmatprep.subr.bf16.mxu0 0
        %778 = vmatpush1.bf16.msra.mxu0 0
        %779 = vmatprep.subr.bf16.mxu0 0
        %780 = vmatpush1.bf16.msra.mxu0 0
        %781 = vmatprep.subr.bf16.mxu0 0
        %782 = vmatpush1.bf16.msra.mxu0 0
        %783 = vmatprep.subr.bf16.mxu0 0
        %784 = vmatpush1.bf16.msra.mxu0 0
        %785 = vmatprep.subr.bf16.mxu0 0
        %786 = vmatpush1.bf16.msra.mxu0 0
        %787 = vmatprep.subr.bf16.mxu0 0
        %788 = vmatpush1.bf16.msra.mxu0 0
        %789 = vmatprep.mubr.bf16.mxu0 0
        %790 = vmatmul.mubr.bf16.gmra.mrb[0].mxu0 %v752
        %v791 = vpop.f32.mrb[0].mxu0
        %v792 = vadd.f32 0.0, %v791
        %v793 = vpop.f32.mrb[0].mxu0
        %v794 = vpop.f32.mrb[0].mxu0
        %v795 = vpop.f32.mrb[0].mxu0
        %796 = vdwg.mxu0
        %797 = vrot.lane.b32.xlu0 %v458, 104
        %v798 = vpop.permute.xlu0 %797
        %799 = vrot.lane.b32.xlu0 %v458, 72
        %v800 = vpop.permute.xlu0 %799
        %v802 = vsel %vm462, %v798, 0
        %v805 = vsel %vm462, %v800, 0
        %807 = vmatprep.subr.bf16.mxu0 0
        %808 = vmatpush1.bf16.xpose.msra.mxu0 %v805
        %809 = vmatprep.subr.bf16.mxu0 0
        %810 = vmatpush1.bf16.xpose.msra.mxu0 0
        %811 = vmatprep.subr.bf16.mxu0 0
        %812 = vmatpush1.bf16.xpose.msra.mxu0 0
        %813 = vmatprep.subr.bf16.mxu0 0
        %814 = vmatpush1.bf16.xpose.msra.mxu0 0
        %815 = vmatprep.subr.bf16.mxu0 0
        %816 = vmatpush1.bf16.xpose.msra.mxu0 0
        %817 = vmatprep.subr.bf16.mxu0 0
        %818 = vmatpush1.bf16.xpose.msra.mxu0 0
        %819 = vmatprep.subr.bf16.mxu0 0
        %820 = vmatpush1.bf16.xpose.msra.mxu0 0
        %821 = vmatprep.subr.bf16.mxu0 0
        %822 = vmatpush1.bf16.xpose.msra.mxu0 0
        %823 = vmatprep.subr.bf16.mxu0 0
        %824 = vmatpush1.bf16.xpose.msra.mxu0 0
        %825 = vmatprep.subr.bf16.mxu0 0
        %826 = vmatpush1.bf16.xpose.msra.mxu0 0
        %827 = vmatprep.subr.bf16.mxu0 0
        %828 = vmatpush1.bf16.xpose.msra.mxu0 0
        %829 = vmatprep.subr.bf16.mxu0 0
        %830 = vmatpush1.bf16.xpose.msra.mxu0 0
        %831 = vmatprep.subr.bf16.mxu0 0
        %832 = vmatpush1.bf16.xpose.msra.mxu0 0
        %833 = vmatprep.subr.bf16.mxu0 0
        %834 = vmatpush1.bf16.xpose.msra.mxu0 0
        %835 = vmatprep.subr.bf16.mxu0 0
        %836 = vmatpush1.bf16.xpose.msra.mxu0 0
        %837 = vmatprep.subr.bf16.mxu0 0
        %838 = vmatpush1.bf16.xpose.msra.mxu0 0
        %839 = vmatprep.mubr.bf16.mxu0 0
        %840 = vmatmul.mubr.bf16.gmra.mrb[0].mxu0 %v802
        %v841 = vpop.f32.mrb[0].mxu0
        %v842 = vadd.f32 0.0, %v841
        %v843 = vpop.f32.mrb[0].mxu0
        %v844 = vpop.f32.mrb[0].mxu0
        %v845 = vpop.f32.mrb[0].mxu0
        %846 = vdwg.mxu0
        %v847 = vmul.f32 %v842, 0.35355338
        %v848 = vsel %vm510, -1e+18, %v847
        %v849 = vsel %vm462, %v848, -inf
        %850 = vmax.xlane.f32.xlu0 %v849
        %v851 = vpop.xlane.xlu0 %850
        %v852 = vsub.f32 %v848, %v851
        %v853 = vmul.f32 %v852, 1.442695
        %v854 = vpow.pop %v853
        %v855 = vsel %vm462, %v854, 0.0
        %856 = vadd.xlane.f32.xlu0 %v855
        %v857 = vpop.xlane.xlu0 %856
        %v858 = vrcp.pop %v857
        %v859 = vmul.f32 %v854, %v858
        %v860 = vpack.c.bf16 %v859, %v859
        %861 = vrot.lane.b32.xlu0 %v458, 40
        %v862 = vpop.permute.xlu0 %861
        %v864 = vsel %vm462, %v860, 0
        %v867 = vsel %vm529, %v862, 0
        %869 = vmatprep.subr.bf16.mxu0 0
        %870 = vmatpush1.bf16.msra.mxu0 %v867
        %871 = vmatprep.subr.bf16.mxu0 0
        %872 = vmatpush1.bf16.msra.mxu0 0
        %873 = vmatprep.subr.bf16.mxu0 0
        %874 = vmatpush1.bf16.msra.mxu0 0
        %875 = vmatprep.subr.bf16.mxu0 0
        %876 = vmatpush1.bf16.msra.mxu0 0
        %877 = vmatprep.subr.bf16.mxu0 0
        %878 = vmatpush1.bf16.msra.mxu0 0
        %879 = vmatprep.subr.bf16.mxu0 0
        %880 = vmatpush1.bf16.msra.mxu0 0
        %881 = vmatprep.subr.bf16.mxu0 0
        %882 = vmatpush1.bf16.msra.mxu0 0
        %883 = vmatprep.subr.bf16.mxu0 0
        %884 = vmatpush1.bf16.msra.mxu0 0
        %885 = vmatprep.subr.bf16.mxu0 0
        %886 = vmatpush1.bf16.msra.mxu0 0
        %887 = vmatprep.subr.bf16.mxu0 0
        %888 = vmatpush1.bf16.msra.mxu0 0
        %889 = vmatprep.subr.bf16.mxu0 0
        %890 = vmatpush1.bf16.msra.mxu0 0
        %891 = vmatprep.subr.bf16.mxu0 0
        %892 = vmatpush1.bf16.msra.mxu0 0
        %893 = vmatprep.subr.bf16.mxu0 0
        %894 = vmatpush1.bf16.msra.mxu0 0
        %895 = vmatprep.subr.bf16.mxu0 0
        %896 = vmatpush1.bf16.msra.mxu0 0
        %897 = vmatprep.subr.bf16.mxu0 0
        %898 = vmatpush1.bf16.msra.mxu0 0
        %899 = vmatprep.subr.bf16.mxu0 0
        %900 = vmatpush1.bf16.msra.mxu0 0
        %901 = vmatprep.mubr.bf16.mxu0 0
        %902 = vmatmul.mubr.bf16.gmra.mrb[0].mxu0 %v864
        %v903 = vpop.f32.mrb[0].mxu0
        %v904 = vadd.f32 0.0, %v903
        %v905 = vpop.f32.mrb[0].mxu0
        %v906 = vpop.f32.mrb[0].mxu0
        %v907 = vpop.f32.mrb[0].mxu0
        %908 = vdwg.mxu0
        %910 = vrot.lane.b32.xlu0 %v680, 8
        %v911 = vpop.permute.xlu0 %910
        %914 = vrot.lane.b32.xlu0 %v792, 16
        %v915 = vpop.permute.xlu0 %914
        %918 = vrot.lane.b32.xlu0 %v904, 24
        %v919 = vpop.permute.xlu0 %918
        %v921 = vsel %vm462, %v568, %v911
        %vm922 = vcmask 130048
        %v923 = vsel %vm922, %v921, %v915
        %vm924 = vcmask 195584
        %v925 = vsel %vm924, %v923, %v919
        %v926 = vpack.c.bf16 %v925, %v925
        %v927 = vld [vmem:[#allocation8] sm:$0xf]
        %v928 = vld [vmem:[#allocation8 + $0x4] sm:$0xf]
        %v929 = vld [vmem:[#allocation8 + $0x8] sm:$0xf]
        %v930 = vld [vmem:[#allocation8 + $0xc] sm:$0xf]
        %v931 = vld [vmem:[%s5] sm:$0x1]
        %v933 = vlaneseq
        %v934 = vshrl.u32 %v933, 7
        %v935 = vsub.s32 0, %v934
        %v936 = vrot.slane %v931, %v935
        %v942 = vunpack.c.l.b16 %v927
        %v943 = vunpack.c.l.b16 %v928
        %v944 = vunpack.c.l.b16 %v929
        %v945 = vunpack.c.l.b16 %v930
        %v946 = vpack.c.b16 %v943, %v942
        %v947 = vpack.c.b16 %v945, %v944
        %v951 = vsel %vm413, %v926, 0
        %953 = vmatprep.subr.bf16.mxu0 0
        %954 = vmatpush1.bf16.msra.mxu0 %v946
        %955 = vmatprep.subr.bf16.mxu0 0
        %956 = vmatpush1.bf16.msra.mxu0 %v947
        %957 = vmatprep.subr.bf16.mxu0 0
        %958 = vmatpush1.bf16.msra.mxu0 0
        %959 = vmatprep.subr.bf16.mxu0 0
        %960 = vmatpush1.bf16.msra.mxu0 0
        %961 = vmatprep.subr.bf16.mxu0 0
        %962 = vmatpush1.bf16.msra.mxu0 0
        %963 = vmatprep.subr.bf16.mxu0 0
        %964 = vmatpush1.bf16.msra.mxu0 0
        %965 = vmatprep.subr.bf16.mxu0 0
        %966 = vmatpush1.bf16.msra.mxu0 0
        %967 = vmatprep.subr.bf16.mxu0 0
        %968 = vmatpush1.bf16.msra.mxu0 0
        %969 = vmatprep.subr.bf16.mxu0 0
        %970 = vmatpush1.bf16.msra.mxu0 0
        %971 = vmatprep.subr.bf16.mxu0 0
        %972 = vmatpush1.bf16.msra.mxu0 0
        %973 = vmatprep.subr.bf16.mxu0 0
        %974 = vmatpush1.bf16.msra.mxu0 0
        %975 = vmatprep.subr.bf16.mxu0 0
        %976 = vmatpush1.bf16.msra.mxu0 0
        %977 = vmatprep.subr.bf16.mxu0 0
        %978 = vmatpush1.bf16.msra.mxu0 0
        %979 = vmatprep.subr.bf16.mxu0 0
        %980 = vmatpush1.bf16.msra.mxu0 0
        %981 = vmatprep.subr.bf16.mxu0 0
        %982 = vmatpush1.bf16.msra.mxu0 0
        %983 = vmatprep.subr.bf16.mxu0 0
        %984 = vmatpush1.bf16.msra.mxu0 0
        %985 = vmatprep.mubr.bf16.mxu0 0
        %986 = vmatmul.mubr.bf16.gmra.mrb[0].mxu0 %v951
        %v987 = vpop.f32.mrb[0].mxu0
        %v988 = vadd.f32 %v936, %v987
        %v989 = vpop.f32.mrb[0].mxu0
        %v990 = vpop.f32.mrb[0].mxu0
        %v991 = vpop.f32.mrb[0].mxu0
        %992 = vdwg.mxu0
        %v993 = vadd.f32 %v988, %v388
        %v994 = vld [vmem:[%s6] sm:$0x1]
        %v995 = vld [vmem:[%s7] sm:$0x1]
        %v996 = vsel %vm413, %v993, 0.0
        %997 = vadd.xlane.f32.xlu0 %v996
        %v998 = vpop.xlane.xlu0 %997
        %v999 = vrcp.pop 32.0
        %v1000 = vmul.f32 %v998, %v999
        %v1001 = vsub.f32 %v993, %v1000
        %v1002 = vmul.f32 %v1001, %v1001
        %v1003 = vsel %vm413, %v1002, 0.0
        %1004 = vadd.xlane.f32.xlu0 %v1003
        %v1005 = vpop.xlane.xlu0 %1004
        %v1006 = vmul.f32 %v1005, 0.032258064
        %v1007 = vrsqrt.pop %v1006
        %v1008 = vmul.f32 %v1006, %v1007
        %vm1009 = vcmp.eq.f32.partialorder %v1006, inf
        %v1010 = vsel %vm1009, %v1006, %v1008
        %vm1011 = vcmp.eq.f32.partialorder %v1006, 0.0
        %v1012 = vand.u32 %v1006, 2147483648
        %v1013 = vsel %vm1011, %v1012, %v1010
        %v1015 = vlaneseq
        %v1016 = vshrl.u32 %v1015, 7
        %v1017 = vsub.s32 0, %v1016
        %v1018 = vrot.slane %v994, %v1017
        %v1020 = vmul.f32 %v1018, %v1001
        %v1021 = vadd.f32 %v1013, 1e-06
        %v1022 = vrcp.pop %v1021
        %v1023 = vmul.f32 %v1020, %v1022
        %v1025 = vlaneseq
        %v1026 = vshrl.u32 %v1025, 7
        %v1027 = vsub.s32 0, %v1026
        %v1028 = vrot.slane %v995, %v1027
        %v1030 = vadd.f32 %v1023, %v1028
        %1031 = vst.msk [vmem:[%s386] sm:$0xff] %vm413, %v1030
        %s1032 = sand.u32 %s215, 1
        %s1033 = scalar_lea.sflag [#allocation4], %s1032
        %s1034 = sand.u32 %s215, 1
        %s1035 = smul.addr %s1034, 8
        %s1036 = scalar_lea.vmem [#allocation10], %s1035
        // Predicated region
        $region69: #{tpu_custom_call.1} parent=51 // pred_check
          %p1037 = pneg %p225
        $region70: #{tpu_custom_call.1} parent=51 // pred_check_branch
          %1039 = sbr.rel (%p1037) target = $region72
        $region71: #{tpu_custom_call.1} parent=51 // pred_region
          %s1041 = ssub.s32 128, 128
          %1042 = vsyncadd %s1033, %s1041
          %s1043 = smul.addr %s29, 128
          %s1044 = scalar_lea.hbm %s8, %s1043
          %s1046 = sshll.u32 %s1036, 4
          %s1047 = int_to_ptr.vmem [resolvable:$true] %s1046
          %1049 = dma.vmem_to_hbm [thread:$0]  %s1047, 128, %s1044, %s1033
        $region72: #{tpu_custom_call.1} parent=51 // pred_fallthru
          _
      $region52: #{tpu_custom_call.1} parent=5 // pred_fallthru
        _
      %p1050 = scmp.le.s32.totalorder 2, %s24
      // Predicated region
      $region73: #{tpu_custom_call.1} parent=5 // pred_check
        %p1051 = pneg %p1050
      $region74: #{tpu_custom_call.1} parent=5 // pred_check_branch
        %1053 = sbr.rel (%p1051) target = $region76
      $region75: #{tpu_custom_call.1} parent=5 // pred_region
        %s1054 = ssub.s32 %s24, 2
        // Predicated region
        $region77: #{tpu_custom_call.1} parent=75 // pred_check
          %p1055 = pneg %p231
        $region78: #{tpu_custom_call.1} parent=75 // pred_check_branch
          %1057 = sbr.rel (%p1055) target = $region80
        $region79: #{tpu_custom_call.1} parent=75 // pred_region
          %s1058 = sand.u32 %s216, 1
          %s1059 = scalar_lea.sflag [#allocation4], %s1058
          %s1060 = sand.u32 %s216, 1
          %s1061 = smul.addr %s1060, 8
          %s1062 = scalar_lea.vmem [#allocation10], %s1061
          %1063 = dma.done %s1059, 128
        $region80: #{tpu_custom_call.1} parent=75 // pred_fallthru
          _
      $region76: #{tpu_custom_call.1} parent=5 // pred_fallthru
        _
    $region6: #{tpu_custom_call.1} parent=1 // loop_footer
      %s28 = sadd.s32 1, %s24
    $region7: #{tpu_custom_call.1} parent=1 // loop_footer_branch
      %23 = sbr.rel target = $region3
    $region8: #{tpu_custom_call.1} parent=1 // loop_exit
      _
    %1064 = vsyncpa [#allocation3], 1
    %s1065 = scalar_lea.sflag [#allocation3], 1
    %1066 = vsyncpa %s1065, 1
    %1067 = vsyncpa [#allocation6], 1
    %s1068 = scalar_lea.sflag [#allocation6], 1
    %1069 = vsyncpa %s1068, 1
    %1070 = vsyncpa [#allocation9], 1
    %1071 = vsyncpa [#allocation4], 1
    %s1072 = scalar_lea.sflag [#allocation4], 1
    %1073 = vsyncpa %s1072, 1

</llo_original>
